<compile_context>
chip_gen: v6e
topology: v6e:2x2x1
jax: 0.10.0
libtpu: 0.0.40
codegen_flags: <defaults>
</compile_context>

<pallas_src>
import functools

import jax
import jax.numpy as jnp
from jax.experimental import pallas as pl
from jax.experimental.pallas import tpu as pltpu


def _distortion_kernel(x_rows_ref, xt_ref, sq_rows_ref, sq_all_ref, dmat_ref,
                       out_ref, acc_ref, *, n_total):
    i = pl.program_id(0)

    @pl.when(i == 0)
    def _():
        acc_ref[...] = jnp.zeros_like(acc_ref)

    xr = x_rows_ref[...]                                    # (TM, E)
    # MXU gram matrix: x_i . x_j for this row tile against all rows.
    gram = jnp.dot(xr, xt_ref[...],
                   preferred_element_type=jnp.float32,
                   precision=jax.lax.Precision.HIGHEST)     # (TM, N)
    d2 = sq_rows_ref[...] + sq_all_ref[...] - 2.0 * gram
    d = jnp.sqrt(jnp.maximum(d2, 0.0))                      # (TM, N)

    tm, n = d.shape
    row_ids = jax.lax.broadcasted_iota(jnp.int32, (tm, n), 0) + i * tm
    col_ids = jax.lax.broadcasted_iota(jnp.int32, (tm, n), 1)
    is_diag = row_ids == col_ids

    d = jnp.where(is_diag, 0.0, d)               # exact zero on the diagonal
    dmat = dmat_ref[...]
    denom = dmat + is_diag.astype(jnp.float32)   # row-tile slice of (D + I)
    t = jnp.abs(d - dmat) / denom                # (TM, N)

    # Keep the reduction in vector form per step; full reduce only at the end.
    acc_ref[...] += jnp.sum(t, axis=0, keepdims=True)       # (1, N)

    @pl.when(i == pl.num_programs(0) - 1)
    def _():
        out_ref[0] = jnp.sum(acc_ref[...]) * (
            1.0 / float(n_total * n_total - n_total))


def distortion_loss(mapping, dmat, *, tm=None):
    """loss = sum(|pdist(mapping) - D| / (D + I)) / (N^2 - N)."""
    n, e = mapping.shape
    assert dmat.shape == (n, n)
    if tm is None:
        # Largest 8-aligned row tile (<=128) dividing N: amortizes per-step
        # pipeline overhead while staying VMEM-safe on v7x (64 MiB).
        tm = next((t for t in (128, 64, 32, 16, 8) if n % t == 0), None)
    assert tm is not None and n % tm == 0 and tm % 8 == 0, (n, tm)

    mapping = mapping.astype(jnp.float32)
    dmat = dmat.astype(jnp.float32)
    xt = mapping.T                              # (E, N): MXU-ready RHS
    sq = jnp.sum(mapping * mapping, axis=-1)    # (N,) loop-invariant norms
    sq_rows = sq[:, None]                       # (N, 1) tiled with the rows
    sq_all = sq[None, :]                        # (1, N) resident

    grid = (n // tm,)
    out = pl.pallas_call(
        functools.partial(_distortion_kernel, n_total=n),
        grid=grid,
        in_specs=[
            pl.BlockSpec((tm, e), lambda i: (i, 0)),   # row tile of mapping
            pl.BlockSpec((e, n), lambda i: (0, 0)),    # full mapping^T (resident)
            pl.BlockSpec((tm, 1), lambda i: (i, 0)),   # |x_i|^2 for this tile
            pl.BlockSpec((1, n), lambda i: (0, 0)),    # |x_j|^2 for all rows
            pl.BlockSpec((tm, n), lambda i: (i, 0)),   # row tile of D
        ],
        out_specs=pl.BlockSpec(memory_space=pltpu.MemorySpace.SMEM),
        out_shape=jax.ShapeDtypeStruct((1,), jnp.float32),
        scratch_shapes=[pltpu.VMEM((1, n), jnp.float32)],
        compiler_params=pltpu.CompilerParams(
            # Accumulation across row tiles -> this axis must be sequential.
            # TODO(synk): per-core partial sums to use both v7x TensorCores.
            dimension_semantics=("arbitrary",)),
    )(mapping, xt, sq_rows, sq_all, dmat)
    return out[0]


def distortion_loss_ref(mapping, dmat):
    """Pure-JAX mirror of the PyTorch forward."""
    diff = mapping[:, None, :] - mapping[None, :, :]
    d = jnp.sqrt(jnp.sum(diff * diff, axis=-1))
    n = d.shape[0]
    eye = jnp.eye(n, dtype=jnp.float32)
    t = jnp.abs(d - dmat) / (dmat + eye)
    return t.sum() / (n * n - n)


if __name__ == "__main__":
    key = jax.random.PRNGKey(0)
    k1, k2 = jax.random.split(key)
    N, E = 256, 64   # small, but (8,128)-aligned so stores/loads are lane-dense

    mapping = jax.random.normal(k1, (N, E), dtype=jnp.float32)
    # Deterministic synthetic target distance matrix D (what __init__ takes):
    # pairwise distances of random 3-D points -> symmetric, zero diagonal.
    pts = jax.random.normal(k2, (N, 3), dtype=jnp.float32)
    dmat = jnp.sqrt(
        jnp.sum((pts[:, None, :] - pts[None, :, :]) ** 2, axis=-1)
    ).astype(jnp.float32)

    loss = distortion_loss(mapping, dmat)
    jax.block_until_ready(loss)

    ref = distortion_loss_ref(mapping, dmat)
    assert jnp.allclose(loss, ref, rtol=1e-4, atol=1e-5), (loss, ref)
    print("KERNEL_OK")
</pallas_src>

<mosaic_0001>
module attributes {stable_mosaic.version = 11 : i64} {
  func.func @_distortion_kernel(%arg0: i32, %arg1: memref<128x64xf32, #tpu.memory_space<vmem>>, %arg2: memref<64x256xf32, #tpu.memory_space<vmem>>, %arg3: memref<128x1xf32, #tpu.memory_space<vmem>>, %arg4: memref<1x256xf32, #tpu.memory_space<vmem>>, %arg5: memref<128x256xf32, #tpu.memory_space<vmem>>, %arg6: memref<1xf32, #tpu.memory_space<smem>>, %arg7: memref<1x256xf32, #tpu.memory_space<vmem>>) attributes {dimension_semantics = [#tpu.dimension_semantics<arbitrary>], iteration_bounds = array<i64: 2>, scalar_prefetch = 0 : i64, scratch_operands = 1 : i64, tpu.core_type = #tpu.core_type<tc>, window_params = [{transform_indices = @transform_0, window_bounds = array<i64: 128, 64>}, {pipeline_mode = #tpu.pipeline_mode<synchronous>, transform_indices = @transform_1, window_bounds = array<i64: 64, 256>}, {transform_indices = @transform_2, window_bounds = array<i64: 128, 1>}, {pipeline_mode = #tpu.pipeline_mode<synchronous>, transform_indices = @transform_3, window_bounds = array<i64: 1, 256>}, {transform_indices = @transform_4, window_bounds = array<i64: 128, 256>}, {transform_indices = @transform_5, window_bounds = array<i64: 1>}]} {
    %c0_i32 = arith.constant 0 : i32
    %0 = arith.cmpi eq, %arg0, %c0_i32 : i32
    %1 = arith.extui %0 : i1 to i32
    %c0_i32_0 = arith.constant 0 : i32
    %2 = arith.cmpi ne, %1, %c0_i32_0 : i32
    scf.if %2 {
      %cst_19 = arith.constant 0.000000e+00 : f32
      %40 = vector.broadcast %cst_19 : f32 to vector<1x256xf32>
      %c0_20 = arith.constant 0 : index
      %c0_21 = arith.constant 0 : index
      %41 = vector.load %arg7[%c0_20, %c0_21] : memref<1x256xf32, #tpu.memory_space<vmem>>, vector<1x256xf32>
      tpu.vector_store %arg7[%c0_20, %c0_21], %40 {strides = array<i32>} : memref<1x256xf32, #tpu.memory_space<vmem>>, vector<1x256xf32>,
    } else {
    }
    %c0 = arith.constant 0 : index
    %c0_1 = arith.constant 0 : index
    %3 = vector.load %arg1[%c0, %c0_1] : memref<128x64xf32, #tpu.memory_space<vmem>>, vector<128x64xf32>
    %c0_2 = arith.constant 0 : index
    %c0_3 = arith.constant 0 : index
    %4 = vector.load %arg2[%c0_2, %c0_3] : memref<64x256xf32, #tpu.memory_space<vmem>>, vector<64x256xf32>
    %cst = arith.constant dense<0.000000e+00> : vector<128x256xf32>
    %5 = tpu.matmul %3, %4, %cst {dimension_numbers = #tpu.dot_dimension_numbers<[1], [0], [0], [1], [0, 0, 1, 1], [], []>, precision = #tpu.contract_precision<fp32>} : vector<128x64xf32>, vector<64x256xf32>, vector<128x256xf32> -> vector<128x256xf32>
    %c0_4 = arith.constant 0 : index
    %c0_5 = arith.constant 0 : index
    %6 = vector.load %arg3[%c0_4, %c0_5] : memref<128x1xf32, #tpu.memory_space<vmem>>, vector<128x1xf32>
    %c0_6 = arith.constant 0 : index
    %c0_7 = arith.constant 0 : index
    %7 = vector.load %arg4[%c0_6, %c0_7] : memref<1x256xf32, #tpu.memory_space<vmem>>, vector<1x256xf32>
    %8 = vector.broadcast %6 : vector<128x1xf32> to vector<128x256xf32>
    %9 = vector.broadcast %7 : vector<1x256xf32> to vector<128x256xf32>
    %10 = arith.addf %8, %9 : vector<128x256xf32>
    %cst_8 = arith.constant 2.000000e+00 : f32
    %11 = vector.broadcast %cst_8 : f32 to vector<128x256xf32>
    %12 = arith.mulf %11, %5 : vector<128x256xf32>
    %13 = arith.subf %10, %12 : vector<128x256xf32>
    %cst_9 = arith.constant 0.000000e+00 : f32
    %14 = vector.broadcast %cst_9 : f32 to vector<128x256xf32>
    %15 = arith.maximumf %13, %14 : vector<128x256xf32>
    %16 = math.sqrt %15 : vector<128x256xf32>
    %17 = tpu.iota {dimensions = array<i32: 0>} : vector<128x256xi32>
    %c128_i32 = arith.constant 128 : i32
    %18 = arith.muli %arg0, %c128_i32 : i32
    %19 = vector.broadcast %18 : i32 to vector<128x256xi32>
    %20 = arith.addi %17, %19 : vector<128x256xi32>
    %21 = tpu.iota {dimensions = array<i32: 1>} : vector<128x256xi32>
    %22 = arith.cmpi eq, %20, %21 : vector<128x256xi32>
    %cst_10 = arith.constant 0.000000e+00 : f32
    %23 = vector.broadcast %cst_10 : f32 to vector<128x256xf32>
    %24 = arith.select %22, %23, %16 : vector<128x256xi1>, vector<128x256xf32>
    %c0_11 = arith.constant 0 : index
    %c0_12 = arith.constant 0 : index
    %25 = vector.load %arg5[%c0_11, %c0_12] : memref<128x256xf32, #tpu.memory_space<vmem>>, vector<128x256xf32>
    %26 = arith.extui %22 : vector<128x256xi1> to vector<128x256xi32>
    %27 = arith.sitofp %26 : vector<128x256xi32> to vector<128x256xf32>
    %28 = arith.addf %25, %27 : vector<128x256xf32>
    %29 = arith.subf %24, %25 : vector<128x256xf32>
    %30 = math.absf %29 : vector<128x256xf32>
    %31 = arith.divf %30, %28 : vector<128x256xf32>
    %c0_13 = arith.constant 0 : index
    %c0_14 = arith.constant 0 : index
    %32 = vector.load %arg7[%c0_13, %c0_14] : memref<1x256xf32, #tpu.memory_space<vmem>>, vector<1x256xf32>
    %cst_15 = arith.constant dense<0.000000e+00> : vector<256xf32>
    %33 = vector.multi_reduction <add>, %31, %cst_15 [0] : vector<128x256xf32> to vector<256xf32>
    %34 = vector.shape_cast %33 : vector<256xf32> to vector<1x256xf32>
    %35 = arith.addf %32, %34 : vector<1x256xf32>
    %c0_16 = arith.constant 0 : index
    %c0_17 = arith.constant 0 : index
    %36 = vector.load %arg7[%c0_16, %c0_17] : memref<1x256xf32, #tpu.memory_space<vmem>>, vector<1x256xf32>
    tpu.vector_store %arg7[%c0_16, %c0_17], %35 {strides = array<i32>} : memref<1x256xf32, #tpu.memory_space<vmem>>, vector<1x256xf32>,
    %c1_i32 = arith.constant 1 : i32
    %37 = arith.cmpi eq, %arg0, %c1_i32 : i32
    %38 = arith.extui %37 : i1 to i32
    %c0_i32_18 = arith.constant 0 : i32
    %39 = arith.cmpi ne, %38, %c0_i32_18 : i32
    scf.if %39 {
      %c0_19 = arith.constant 0 : index
      %c0_20 = arith.constant 0 : index
      %40 = vector.load %arg7[%c0_19, %c0_20] : memref<1x256xf32, #tpu.memory_space<vmem>>, vector<1x256xf32>
      %41 = vector.shape_cast %40 : vector<1x256xf32> to vector<1x1x256xf32>
      %cst_21 = arith.constant dense<0.000000e+00> : vector<1xf32>
      %42 = vector.multi_reduction <add>, %41, %cst_21 [1, 2] : vector<1x1x256xf32> to vector<1xf32>
      %43 = vector.shape_cast %42 : vector<1xf32> to vector<1x1x1xf32>
      %44 = vector.extract %43[0, 0, 0] : f32 from vector<1x1x1xf32>
      %cst_22 = arith.constant 1.53186284E-5 : f32
      %45 = arith.mulf %44, %cst_22 : f32
      %c0_23 = arith.constant 0 : index
      %46 = memref.load %arg6[%c0_23] : memref<1xf32, #tpu.memory_space<smem>>
      memref.store %45, %arg6[%c0_23] : memref<1xf32, #tpu.memory_space<smem>>
    } else {
    }
    return
  }
  func.func @transform_0(%arg0: i32) -> (i32, i32) {
    %c0_i32 = arith.constant 0 : i32
    %c0_i32_0 = arith.constant 0 : i32
    return %arg0, %c0_i32 : i32, i32
  }
  func.func @transform_1(%arg0: i32) -> (i32, i32) {
    %c0_i32 = arith.constant 0 : i32
    %c0_i32_0 = arith.constant 0 : i32
    %c0_i32_1 = arith.constant 0 : i32
    return %c0_i32, %c0_i32_0 : i32, i32
  }
  func.func @transform_2(%arg0: i32) -> (i32, i32) {
    %c0_i32 = arith.constant 0 : i32
    %c0_i32_0 = arith.constant 0 : i32
    return %arg0, %c0_i32 : i32, i32
  }
  func.func @transform_3(%arg0: i32) -> (i32, i32) {
    %c0_i32 = arith.constant 0 : i32
    %c0_i32_0 = arith.constant 0 : i32
    %c0_i32_1 = arith.constant 0 : i32
    return %c0_i32, %c0_i32_0 : i32, i32
  }
  func.func @transform_4(%arg0: i32) -> (i32, i32) {
    %c0_i32 = arith.constant 0 : i32
    %c0_i32_0 = arith.constant 0 : i32
    return %arg0, %c0_i32 : i32, i32
  }
  func.func @transform_5(%arg0: i32) -> i32 {
    %c0_i32 = arith.constant 0 : i32
    %c0_i32_0 = arith.constant 0 : i32
    return %c0_i32 : i32
  }
}

</mosaic_0001>

<llo_original>
// kernel: tpu_custom_call.1
$region0: #{tpu_custom_call.1}
  #allocation0 [shape = 'u32[]', space=smem, size = 0x4, offset = 0x4, fixed_abs, tag = 'smem constant byte address 0x4 - core index']
  #allocation1 [shape = 'u32[144,128]{1,0:T(1,128)}', space=vmem, size = 0x12000, scoped, tag = 'internal scratch']
  #allocation2 [shape = 'f32[1,256]{1,0:T(1,128)}', space=vmem, size = 0x400, scoped, tag = 'scratch operand']
  %s0 = inlined_call_operand.vmem [shape: f32[256,64], index: 0, kind: input, shape index: {}]
  %s1 = inlined_call_operand.vmem [shape: f32[64,256], index: 1, kind: input, shape index: {}]
  %s2 = inlined_call_operand.vmem [shape: f32[256,1], index: 2, kind: input, shape index: {}]
  %s3 = inlined_call_operand.vmem [shape: f32[1,256], index: 3, kind: input, shape index: {}]
  %s4 = inlined_call_operand.vmem [shape: f32[256,256], index: 4, kind: input, shape index: {}]
  %s5 = inlined_call_operand.hbm [shape: f32[1], index: 5, kind: output, shape index: {}]
  %s6 = sld [smem:[#allocation0]]
  $region61: #{tpu_custom_call.1} parent=0
    _
  %s8 = ssub.s32 1, %s6
  %s9 = scalar_select 0, %s8, %s6
  $region1: #{tpu_custom_call.1} parent=0
    #allocation3 [shape = 'u8[512]{0}', space=smem, size = 0x200, scoped, tag = 'output window, operand 0, single buffered']
    #allocation4 [shape = 's32[2]{0}', space=sflag, size = 0x8, scoped, tag = 'scoped memory for tpu_custom_call.1']
    %10 = vsyncpa [#allocation4], 0
    loop: start=0, step=1, limit=4
    $region2: #{tpu_custom_call.1} parent=1 // loop_pre_header
      _
    $region3: #{tpu_custom_call.1} parent=1 // loop_header
      %s12 = sphi 0, %s16
      %p13 = scmp.ge.s32.totalorder %s12, 4
      %s22 = sphi 0, %s24
      %s25 = sphi 0, %s22
      %s26 = sphi 0, %s25
      %s42 = sphi 0, %s26
      %s46 = sphi 0, %s46
      %s48 = sphi 0, %s46
      %s49 = sphi 0, %s48
      %s63 = sphi 0, %s49
      %s69 = sphi 0, %s71
      %s72 = sphi 0, %s69
      %s73 = sphi 0, %s72
      %s89 = sphi 0, %s73
      %s93 = sphi 0, %s93
      %s95 = sphi 0, %s93
      %s96 = sphi 0, %s95
      %s110 = sphi 0, %s96
      %s116 = sphi 0, %s118
      %s119 = sphi 0, %s116
      %s120 = sphi 0, %s119
      %s136 = sphi 0, %s120
      %s140 = sphi 0, %s140
      %s142 = sphi 0, %s140
      %s143 = sphi 0, %s142
      %s157 = sphi 0, %s143
    $region4: #{tpu_custom_call.1} parent=1 // loop_header_branch
      %15 = sbr.rel (%p13) target = $region8
    $region5: #{tpu_custom_call.1} parent=1 // loop_body
      %s17 = ssub.s32 %s12, 1
      %s18 = ssub.s32 %s12, 2
      %s19 = sadd.s32 %s12, 1
      %s20 = ssub.s32 %s12, %s19
      %p21 = scmp.eq.s32.totalorder %s20, 0
      %s23 = sadd.s32 %s22, 1
      %s24 = scalar_select %p21, %s22, %s23
      %p27 = pneg %p21
      %p28 = scmp.eq.s32.totalorder %s12, 1
      %p29 = por %p27, %p28
      %p30 = scmp.ne.s32.totalorder %s22, %s25
      %p31 = scmp.eq.s32.totalorder %s12, 0
      %p32 = por %p30, %p31
      %p33 = scmp.ne.s32.totalorder %s22, %s25
      %p34 = scmp.eq.s32.totalorder %s17, 1
      %p35 = por %p33, %p34
      %p36 = scmp.ne.s32.totalorder %s25, %s26
      %p37 = scmp.eq.s32.totalorder %s17, 0
      %p38 = por %p36, %p37
      %p39 = scmp.ne.s32.totalorder %s25, %s26
      %p40 = scmp.eq.s32.totalorder %s18, 1
      %p41 = por %p39, %p40
      %p43 = scmp.ne.s32.totalorder %s26, %s42
      %p44 = scmp.eq.s32.totalorder %s18, 0
      %p45 = por %p43, %p44
      %s47 = sadd.s32 %s46, 1
      %p50 = scmp.eq.s32.totalorder %s12, 1
      %p51 = scmp.ne.s32.totalorder %s46, %s48
      %p52 = scmp.eq.s32.totalorder %s12, 0
      %p53 = por %p51, %p52
      %p54 = scmp.ne.s32.totalorder %s46, %s48
      %p55 = scmp.eq.s32.totalorder %s17, 1
      %p56 = por %p54, %p55
      %p57 = scmp.ne.s32.totalorder %s48, %s49
      %p58 = scmp.eq.s32.totalorder %s17, 0
      %p59 = por %p57, %p58
      %p60 = scmp.ne.s32.totalorder %s48, %s49
      %p61 = scmp.eq.s32.totalorder %s18, 1
      %p62 = por %p60, %p61
      %p64 = scmp.ne.s32.totalorder %s49, %s63
      %p65 = scmp.eq.s32.totalorder %s18, 0
      %p66 = por %p64, %p65
      %s67 = ssub.s32 %s12, %s19
      %p68 = scmp.eq.s32.totalorder %s67, 0
      %s70 = sadd.s32 %s69, 1
      %s71 = scalar_select %p68, %s69, %s70
      %p74 = pneg %p68
      %p75 = scmp.eq.s32.totalorder %s12, 1
      %p76 = por %p74, %p75
      %p77 = scmp.ne.s32.totalorder %s69, %s72
      %p78 = scmp.eq.s32.totalorder %s12, 0
      %p79 = por %p77, %p78
      %p80 = scmp.ne.s32.totalorder %s69, %s72
      %p81 = scmp.eq.s32.totalorder %s17, 1
      %p82 = por %p80, %p81
      %p83 = scmp.ne.s32.totalorder %s72, %s73
      %p84 = scmp.eq.s32.totalorder %s17, 0
      %p85 = por %p83, %p84
      %p86 = scmp.ne.s32.totalorder %s72, %s73
      %p87 = scmp.eq.s32.totalorder %s18, 1
      %p88 = por %p86, %p87
      %p90 = scmp.ne.s32.totalorder %s73, %s89
      %p91 = scmp.eq.s32.totalorder %s18, 0
      %p92 = por %p90, %p91
      %s94 = sadd.s32 %s93, 1
      %p97 = scmp.eq.s32.totalorder %s12, 1
      %p98 = scmp.ne.s32.totalorder %s93, %s95
      %p99 = scmp.eq.s32.totalorder %s12, 0
      %p100 = por %p98, %p99
      %p101 = scmp.ne.s32.totalorder %s93, %s95
      %p102 = scmp.eq.s32.totalorder %s17, 1
      %p103 = por %p101, %p102
      %p104 = scmp.ne.s32.totalorder %s95, %s96
      %p105 = scmp.eq.s32.totalorder %s17, 0
      %p106 = por %p104, %p105
      %p107 = scmp.ne.s32.totalorder %s95, %s96
      %p108 = scmp.eq.s32.totalorder %s18, 1
      %p109 = por %p107, %p108
      %p111 = scmp.ne.s32.totalorder %s96, %s110
      %p112 = scmp.eq.s32.totalorder %s18, 0
      %p113 = por %p111, %p112
      %s114 = ssub.s32 %s12, %s19
      %p115 = scmp.eq.s32.totalorder %s114, 0
      %s117 = sadd.s32 %s116, 1
      %s118 = scalar_select %p115, %s116, %s117
      %p121 = pneg %p115
      %p122 = scmp.eq.s32.totalorder %s12, 1
      %p123 = por %p121, %p122
      %p124 = scmp.ne.s32.totalorder %s116, %s119
      %p125 = scmp.eq.s32.totalorder %s12, 0
      %p126 = por %p124, %p125
      %p127 = scmp.ne.s32.totalorder %s116, %s119
      %p128 = scmp.eq.s32.totalorder %s17, 1
      %p129 = por %p127, %p128
      %p130 = scmp.ne.s32.totalorder %s119, %s120
      %p131 = scmp.eq.s32.totalorder %s17, 0
      %p132 = por %p130, %p131
      %p133 = scmp.ne.s32.totalorder %s119, %s120
      %p134 = scmp.eq.s32.totalorder %s18, 1
      %p135 = por %p133, %p134
      %p137 = scmp.ne.s32.totalorder %s120, %s136
      %p138 = scmp.eq.s32.totalorder %s18, 0
      %p139 = por %p137, %p138
      %s141 = sadd.s32 %s140, 1
      %p144 = scmp.eq.s32.totalorder %s12, 1
      %p145 = scmp.ne.s32.totalorder %s140, %s142
      %p146 = scmp.eq.s32.totalorder %s12, 0
      %p147 = por %p145, %p146
      %p148 = scmp.ne.s32.totalorder %s140, %s142
      %p149 = scmp.eq.s32.totalorder %s17, 1
      %p150 = por %p148, %p149
      %p151 = scmp.ne.s32.totalorder %s142, %s143
      %p152 = scmp.eq.s32.totalorder %s17, 0
      %p153 = por %p151, %p152
      %p154 = scmp.ne.s32.totalorder %s142, %s143
      %p155 = scmp.eq.s32.totalorder %s18, 1
      %p156 = por %p154, %p155
      %p158 = scmp.ne.s32.totalorder %s143, %s157
      %p159 = scmp.eq.s32.totalorder %s18, 0
      %p160 = por %p158, %p159
      %p161 = scmp.le.s32.totalorder 1, %s12
      %p162 = scmp.lt.s32.totalorder %s12, 3
      %p163 = pnand %p161, %p162
      %p164 = pneg %p163
      // Predicated region
      $region9: #{tpu_custom_call.1} parent=5 // pred_check
        _
      $region10: #{tpu_custom_call.1} parent=5 // pred_check_branch
        %166 = sbr.rel (%p163) target = $region12
      $region11: #{tpu_custom_call.1} parent=5 // pred_region
        %s167 = ssub.s32 %s12, 1
        // Predicated region
        $region13: #{tpu_custom_call.1} parent=11 // pred_check
          %p168 = pneg %p59
        $region14: #{tpu_custom_call.1} parent=11 // pred_check_branch
          %170 = sbr.rel (%p168) target = $region16
        $region15: #{tpu_custom_call.1} parent=11 // pred_region
          _
        $region16: #{tpu_custom_call.1} parent=11 // pred_fallthru
          _
        // Predicated region
        $region17: #{tpu_custom_call.1} parent=11 // pred_check
          %p171 = pneg %p106
        $region18: #{tpu_custom_call.1} parent=11 // pred_check_branch
          %173 = sbr.rel (%p171) target = $region20
        $region19: #{tpu_custom_call.1} parent=11 // pred_region
          _
        $region20: #{tpu_custom_call.1} parent=11 // pred_fallthru
          _
      $region12: #{tpu_custom_call.1} parent=5 // pred_fallthru
        _
      %p174 = scmp.lt.s32.totalorder %s12, 2
      // Predicated region
      $region21: #{tpu_custom_call.1} parent=5 // pred_check
        %p175 = pneg %p174
      $region22: #{tpu_custom_call.1} parent=5 // pred_check_branch
        %177 = sbr.rel (%p175) target = $region24
      $region23: #{tpu_custom_call.1} parent=5 // pred_region
        // Predicated region
        $region25: #{tpu_custom_call.1} parent=23 // pred_check
          %p178 = pneg %p32
        $region26: #{tpu_custom_call.1} parent=23 // pred_check_branch
          %180 = sbr.rel (%p178) target = $region28
        $region27: #{tpu_custom_call.1} parent=23 // pred_region
          %s181 = smul.u32 16, %s12
          %p182 = scmp.lt.s32.totalorder %s181, 31
          %s183 = scalar_select %p182, %s181, 31
          %s184 = smul.addr %s183, 8
          %s185 = scalar_lea.vmem %s0, %s184
          %s186 = smul.u32 16, %s12
        $region28: #{tpu_custom_call.1} parent=23 // pred_fallthru
          _
        // Predicated region
        $region29: #{tpu_custom_call.1} parent=23 // pred_check
          %p187 = pneg %p79
        $region30: #{tpu_custom_call.1} parent=23 // pred_check_branch
          %189 = sbr.rel (%p187) target = $region32
        $region31: #{tpu_custom_call.1} parent=23 // pred_region
          %s190 = smul.u32 16, %s12
          %p191 = scmp.lt.s32.totalorder %s190, 31
          %s192 = scalar_select %p191, %s190, 31
          %s193 = smul.addr %s192, 8
          %s194 = scalar_lea.vmem %s2, %s193
          %s195 = smul.u32 16, %s12
        $region32: #{tpu_custom_call.1} parent=23 // pred_fallthru
          _
        // Predicated region
        $region33: #{tpu_custom_call.1} parent=23 // pred_check
          %p196 = pneg %p126
        $region34: #{tpu_custom_call.1} parent=23 // pred_check_branch
          %198 = sbr.rel (%p196) target = $region36
        $region35: #{tpu_custom_call.1} parent=23 // pred_region
          %s199 = smul.u32 16, %s12
          %p200 = scmp.lt.s32.totalorder %s199, 31
          %s201 = scalar_select %p200, %s199, 31
          %s202 = smul.addr %s201, 2
          %s203 = smul.addr %s202, 8
          %s204 = scalar_lea.vmem %s4, %s203
          %s205 = smul.u32 16, %s12
        $region36: #{tpu_custom_call.1} parent=23 // pred_fallthru
          _
      $region24: #{tpu_custom_call.1} parent=5 // pred_fallthru
        _
      %p206 = scmp.le.s32.totalorder 1, %s12
      %p207 = scmp.lt.s32.totalorder %s12, 3
      %p208 = pnand %p206, %p207
      %p209 = pneg %p208
      // Predicated region
      $region37: #{tpu_custom_call.1} parent=5 // pred_check
        _
      $region38: #{tpu_custom_call.1} parent=5 // pred_check_branch
        %211 = sbr.rel (%p208) target = $region40
      $region39: #{tpu_custom_call.1} parent=5 // pred_region
        %s212 = ssub.s32 %s12, 1
        %s213 = smul.u32 16, %s17
        %p214 = scmp.lt.s32.totalorder %s213, 31
        %s215 = scalar_select %p214, %s213, 31
        %s216 = smul.addr %s215, 8
        %s217 = scalar_lea.vmem %s0, %s216
        %p218 = pneg %p38
        %p219 = pneg %p35
        %p220 = pneg %p59
        %p221 = pneg %p56
        %s222 = smul.u32 16, %s17
        %p223 = scmp.lt.s32.totalorder %s222, 31
        %s224 = scalar_select %p223, %s222, 31
        %s225 = smul.addr %s224, 8
        %s226 = scalar_lea.vmem %s2, %s225
        %p227 = pneg %p85
        %p228 = pneg %p82
        %p229 = pneg %p106
        %p230 = pneg %p103
        %s231 = smul.u32 16, %s17
        %p232 = scmp.lt.s32.totalorder %s231, 31
        %s233 = scalar_select %p232, %s231, 31
        %s234 = smul.addr %s233, 2
        %s235 = smul.addr %s234, 8
        %s236 = scalar_lea.vmem %s4, %s235
        %p237 = pneg %p132
        %p238 = pneg %p129
        %p239 = pneg %p153
        %p240 = pneg %p150
        %s241 = smul.u32 16, %s17
        %p242 = scmp.lt.s32.totalorder %s241, 31
        %s243 = scalar_select %p242, %s241, 31
        %s244 = smul.addr %s243, 8
        %s245 = scalar_lea.vmem %s0, %s244
        %s246 = smul.u32 16, %s17
        %s247 = smul.u32 16, %s17
        %p248 = scmp.lt.s32.totalorder %s247, 31
        %s249 = scalar_select %p248, %s247, 31
        %s250 = smul.addr %s249, 8
        %s251 = scalar_lea.vmem %s2, %s250
        %s252 = smul.u32 16, %s17
        %s253 = smul.u32 16, %s17
        %p254 = scmp.lt.s32.totalorder %s253, 31
        %s255 = scalar_select %p254, %s253, 31
        %s256 = smul.addr %s255, 2
        %s257 = smul.addr %s256, 8
        %s258 = scalar_lea.vmem %s4, %s257
        %s259 = smul.u32 16, %s17
        %p260 = scmp.eq.s32.totalorder %s17, 0
        // Predicated region
        $region41: #{tpu_custom_call.1} parent=39 // pred_check
          %p261 = pneg %p260
        $region42: #{tpu_custom_call.1} parent=39 // pred_check_branch
          %263 = sbr.rel (%p261) target = $region44
        $region43: #{tpu_custom_call.1} parent=39 // pred_region
          %v264 = vlaneseq
          %vm265 = vcmp.ge.s32.totalorder %v264, 0
          %vm266 = vcmp.lt.s32.totalorder %v264, 256
          %vm267 = vmand %vm265, %vm266
          %268 = vst.msk [vmem:[#allocation2] sm:$0x3] %vm267, 0.0
        $region44: #{tpu_custom_call.1} parent=39 // pred_fallthru
          _
        %v269 = vld [vmem:[%s245] sm:$0xff]
        %v270 = vld [vmem:[%s245 + $0x8] sm:$0xff]
        %v271 = vld [vmem:[%s245 + $0x10] sm:$0xff]
        %v272 = vld [vmem:[%s245 + $0x18] sm:$0xff]
        %v273 = vld [vmem:[%s245 + $0x20] sm:$0xff]
        %v274 = vld [vmem:[%s245 + $0x28] sm:$0xff]
        %v275 = vld [vmem:[%s245 + $0x30] sm:$0xff]
        %v276 = vld [vmem:[%s245 + $0x38] sm:$0xff]
        %v277 = vld [vmem:[%s245 + $0x40] sm:$0xff]
        %v278 = vld [vmem:[%s245 + $0x48] sm:$0xff]
        %v279 = vld [vmem:[%s245 + $0x50] sm:$0xff]
        %v280 = vld [vmem:[%s245 + $0x58] sm:$0xff]
        %v281 = vld [vmem:[%s245 + $0x60] sm:$0xff]
        %v282 = vld [vmem:[%s245 + $0x68] sm:$0xff]
        %v283 = vld [vmem:[%s245 + $0x70] sm:$0xff]
        %v284 = vld [vmem:[%s245 + $0x78] sm:$0xff]
        %v285 = vld [vmem:[%s1] sm:$0xff]
        %v286 = vld [vmem:[%s1 + $0x8] sm:$0xff]
        %v287 = vld [vmem:[%s1 + $0x10] sm:$0xff]
        %v288 = vld [vmem:[%s1 + $0x18] sm:$0xff]
        %v289 = vld [vmem:[%s1 + $0x20] sm:$0xff]
        %v290 = vld [vmem:[%s1 + $0x28] sm:$0xff]
        %v291 = vld [vmem:[%s1 + $0x30] sm:$0xff]
        %v292 = vld [vmem:[%s1 + $0x38] sm:$0xff]
        %v293 = vld [vmem:[%s1 + $0x40] sm:$0xff]
        %v294 = vld [vmem:[%s1 + $0x48] sm:$0xff]
        %v295 = vld [vmem:[%s1 + $0x50] sm:$0xff]
        %v296 = vld [vmem:[%s1 + $0x58] sm:$0xff]
        %v297 = vld [vmem:[%s1 + $0x60] sm:$0xff]
        %v298 = vld [vmem:[%s1 + $0x68] sm:$0xff]
        %v299 = vld [vmem:[%s1 + $0x70] sm:$0xff]
        %v300 = vld [vmem:[%s1 + $0x78] sm:$0xff]
        %vm301 = vcmask 523264
        %v303 = vsel %vm301, %v269, 0
        %v306 = vsel %vm301, %v270, 0
        %v309 = vsel %vm301, %v271, 0
        %v312 = vsel %vm301, %v272, 0
        %v315 = vsel %vm301, %v273, 0
        %v318 = vsel %vm301, %v274, 0
        %v321 = vsel %vm301, %v275, 0
        %v324 = vsel %vm301, %v276, 0
        %v327 = vsel %vm301, %v277, 0
        %v330 = vsel %vm301, %v278, 0
        %v333 = vsel %vm301, %v279, 0
        %v336 = vsel %vm301, %v280, 0
        %v339 = vsel %vm301, %v281, 0
        %v342 = vsel %vm301, %v282, 0
        %v345 = vsel %vm301, %v283, 0
        %v348 = vsel %vm301, %v284, 0
        %350 = vmatprep.subr.mxu0 0.0
        %351 = vmatpush1.msra.mxu0 0.0
        %352 = vmatprep.subr.mxu0 0.0
        %353 = vmatpush1.msra.mxu0 0.0
        %354 = vmatprep.subr.mxu0 0.0
        %355 = vmatpush1.msra.mxu0 0.0
        %356 = vmatprep.subr.mxu0 0.0
        %357 = vmatpush1.msra.mxu0 0.0
        %358 = vmatprep.subr.mxu0 0.0
        %359 = vmatpush1.msra.mxu0 0.0
        %360 = vmatprep.subr.mxu0 0.0
        %361 = vmatpush1.msra.mxu0 0.0
        %362 = vmatprep.subr.mxu0 0.0
        %363 = vmatpush1.msra.mxu0 0.0
        %364 = vmatprep.subr.mxu0 0.0
        %365 = vmatpush1.msra.mxu0 0.0
        %v366 = vand.u32 %v300, 4294901760
        %367 = vmatprep.subr.mxu0 %v366
        %v368 = vand.u32 %v299, 4294901760
        %369 = vmatpush1.msra.mxu0 %v368
        %v370 = vand.u32 %v298, 4294901760
        %371 = vmatprep.subr.mxu0 %v370
        %v372 = vand.u32 %v297, 4294901760
        %373 = vmatpush1.msra.mxu0 %v372
        %v374 = vand.u32 %v296, 4294901760
        %375 = vmatprep.subr.mxu0 %v374
        %v376 = vand.u32 %v295, 4294901760
        %377 = vmatpush1.msra.mxu0 %v376
        %v378 = vand.u32 %v294, 4294901760
        %379 = vmatprep.subr.mxu0 %v378
        %v380 = vand.u32 %v293, 4294901760
        %381 = vmatpush1.msra.mxu0 %v380
        %v382 = vand.u32 %v292, 4294901760
        %383 = vmatprep.subr.mxu0 %v382
        %v384 = vand.u32 %v291, 4294901760
        %385 = vmatpush1.msra.mxu0 %v384
        %v386 = vand.u32 %v290, 4294901760
        %387 = vmatprep.subr.mxu0 %v386
        %v388 = vand.u32 %v289, 4294901760
        %389 = vmatpush1.msra.mxu0 %v388
        %v390 = vand.u32 %v288, 4294901760
        %391 = vmatprep.subr.mxu0 %v390
        %v392 = vand.u32 %v287, 4294901760
        %393 = vmatpush1.msra.mxu0 %v392
        %v394 = vand.u32 %v286, 4294901760
        %395 = vmatprep.subr.mxu0 %v394
        %v396 = vand.u32 %v285, 4294901760
        %397 = vmatpush1.msra.mxu0 %v396
        %398 = vmatprep.subr.mxu0 0.0
        %399 = vmatpush2.msra.mxu0 0.0
        %400 = vmatprep.subr.mxu0 0.0
        %401 = vmatpush2.msra.mxu0 0.0
        %402 = vmatprep.subr.mxu0 0.0
        %403 = vmatpush2.msra.mxu0 0.0
        %404 = vmatprep.subr.mxu0 0.0
        %405 = vmatpush2.msra.mxu0 0.0
        %406 = vmatprep.subr.mxu0 0.0
        %407 = vmatpush2.msra.mxu0 0.0
        %408 = vmatprep.subr.mxu0 0.0
        %409 = vmatpush2.msra.mxu0 0.0
        %410 = vmatprep.subr.mxu0 0.0
        %411 = vmatpush2.msra.mxu0 0.0
        %412 = vmatprep.subr.mxu0 0.0
        %413 = vmatpush2.msra.mxu0 0.0
        %414 = vmatprep.subr.mxu0 0.0
        %415 = vmatpush2.msra.mxu0 0.0
        %416 = vmatprep.subr.mxu0 0.0
        %417 = vmatpush2.msra.mxu0 0.0
        %418 = vmatprep.subr.mxu0 0.0
        %419 = vmatpush2.msra.mxu0 0.0
        %420 = vmatprep.subr.mxu0 0.0
        %421 = vmatpush2.msra.mxu0 0.0
        %422 = vmatprep.subr.mxu0 0.0
        %423 = vmatpush2.msra.mxu0 0.0
        %424 = vmatprep.subr.mxu0 0.0
        %425 = vmatpush2.msra.mxu0 0.0
        %426 = vmatprep.subr.mxu0 0.0
        %427 = vmatpush2.msra.mxu0 0.0
        %428 = vmatprep.subr.mxu0 0.0
        %429 = vmatpush2.msra.mxu0 0.0
        %430 = vmatprep.mubr.f32.mxu0 0.0
        %v431 = vand.u32 %v303, 4294901760
        %v432 = vsub.f32 %v303, %v431
        %v433 = vand.u32 %v432, 4294901760
        %v434 = vsub.f32 %v432, %v433
        %v435 = vand.u32 %v434, 4294901760
        %436 = vmatmul.mubr.f32.gmra.mxu0 %v435
        %v437 = vpop.f32.mrf.mxu0
        %v438 = vadd.f32 0.0, %v437
        %v439 = vpop.f32.mrf.mxu0
        %v440 = vadd.f32 0.0, %v439
        %441 = vmatprep.mubr.f32.mxu0 0.0
        %v442 = vand.u32 %v306, 4294901760
        %v443 = vsub.f32 %v306, %v442
        %v444 = vand.u32 %v443, 4294901760
        %v445 = vsub.f32 %v443, %v444
        %v446 = vand.u32 %v445, 4294901760
        %447 = vmatmul.mubr.f32.gmra.mxu0 %v446
        %v448 = vpop.f32.mrf.mxu0
        %v449 = vadd.f32 0.0, %v448
        %v450 = vpop.f32.mrf.mxu0
        %v451 = vadd.f32 0.0, %v450
        %452 = vmatprep.mubr.f32.mxu0 0.0
        %v453 = vand.u32 %v309, 4294901760
        %v454 = vsub.f32 %v309, %v453
        %v455 = vand.u32 %v454, 4294901760
        %v456 = vsub.f32 %v454, %v455
        %v457 = vand.u32 %v456, 4294901760
        %458 = vmatmul.mubr.f32.gmra.mxu0 %v457
        %v459 = vpop.f32.mrf.mxu0
        %v460 = vadd.f32 0.0, %v459
        %v461 = vpop.f32.mrf.mxu0
        %v462 = vadd.f32 0.0, %v461
        %463 = vmatprep.mubr.f32.mxu0 0.0
        %v464 = vand.u32 %v312, 4294901760
        %v465 = vsub.f32 %v312, %v464
        %v466 = vand.u32 %v465, 4294901760
        %v467 = vsub.f32 %v465, %v466
        %v468 = vand.u32 %v467, 4294901760
        %469 = vmatmul.mubr.f32.gmra.mxu0 %v468
        %v470 = vpop.f32.mrf.mxu0
        %v471 = vadd.f32 0.0, %v470
        %v472 = vpop.f32.mrf.mxu0
        %v473 = vadd.f32 0.0, %v472
        %474 = vmatprep.mubr.f32.mxu0 0.0
        %v475 = vand.u32 %v315, 4294901760
        %v476 = vsub.f32 %v315, %v475
        %v477 = vand.u32 %v476, 4294901760
        %v478 = vsub.f32 %v476, %v477
        %v479 = vand.u32 %v478, 4294901760
        %480 = vmatmul.mubr.f32.gmra.mxu0 %v479
        %v481 = vpop.f32.mrf.mxu0
        %v482 = vadd.f32 0.0, %v481
        %v483 = vpop.f32.mrf.mxu0
        %v484 = vadd.f32 0.0, %v483
        %485 = vmatprep.mubr.f32.mxu0 0.0
        %v486 = vand.u32 %v318, 4294901760
        %v487 = vsub.f32 %v318, %v486
        %v488 = vand.u32 %v487, 4294901760
        %v489 = vsub.f32 %v487, %v488
        %v490 = vand.u32 %v489, 4294901760
        %491 = vmatmul.mubr.f32.gmra.mxu0 %v490
        %v492 = vpop.f32.mrf.mxu0
        %v493 = vadd.f32 0.0, %v492
        %v494 = vpop.f32.mrf.mxu0
        %v495 = vadd.f32 0.0, %v494
        %496 = vmatprep.mubr.f32.mxu0 0.0
        %v497 = vand.u32 %v321, 4294901760
        %v498 = vsub.f32 %v321, %v497
        %v499 = vand.u32 %v498, 4294901760
        %v500 = vsub.f32 %v498, %v499
        %v501 = vand.u32 %v500, 4294901760
        %502 = vmatmul.mubr.f32.gmra.mxu0 %v501
        %v503 = vpop.f32.mrf.mxu0
        %v504 = vadd.f32 0.0, %v503
        %v505 = vpop.f32.mrf.mxu0
        %v506 = vadd.f32 0.0, %v505
        %507 = vmatprep.mubr.f32.mxu0 0.0
        %v508 = vand.u32 %v324, 4294901760
        %v509 = vsub.f32 %v324, %v508
        %v510 = vand.u32 %v509, 4294901760
        %v511 = vsub.f32 %v509, %v510
        %v512 = vand.u32 %v511, 4294901760
        %513 = vmatmul.mubr.f32.gmra.mxu0 %v512
        %v514 = vpop.f32.mrf.mxu0
        %v515 = vadd.f32 0.0, %v514
        %v516 = vpop.f32.mrf.mxu0
        %v517 = vadd.f32 0.0, %v516
        %518 = vmatprep.mubr.f32.mxu0 0.0
        %v519 = vand.u32 %v327, 4294901760
        %v520 = vsub.f32 %v327, %v519
        %v521 = vand.u32 %v520, 4294901760
        %v522 = vsub.f32 %v520, %v521
        %v523 = vand.u32 %v522, 4294901760
        %524 = vmatmul.mubr.f32.gmra.mxu0 %v523
        %v525 = vpop.f32.mrf.mxu0
        %v526 = vadd.f32 0.0, %v525
        %v527 = vpop.f32.mrf.mxu0
        %v528 = vadd.f32 0.0, %v527
        %529 = vmatprep.mubr.f32.mxu0 0.0
        %v530 = vand.u32 %v330, 4294901760
        %v531 = vsub.f32 %v330, %v530
        %v532 = vand.u32 %v531, 4294901760
        %v533 = vsub.f32 %v531, %v532
        %v534 = vand.u32 %v533, 4294901760
        %535 = vmatmul.mubr.f32.gmra.mxu0 %v534
        %v536 = vpop.f32.mrf.mxu0
        %v537 = vadd.f32 0.0, %v536
        %v538 = vpop.f32.mrf.mxu0
        %v539 = vadd.f32 0.0, %v538
        %540 = vmatprep.mubr.f32.mxu0 0.0
        %v541 = vand.u32 %v333, 4294901760
        %v542 = vsub.f32 %v333, %v541
        %v543 = vand.u32 %v542, 4294901760
        %v544 = vsub.f32 %v542, %v543
        %v545 = vand.u32 %v544, 4294901760
        %546 = vmatmul.mubr.f32.gmra.mxu0 %v545
        %v547 = vpop.f32.mrf.mxu0
        %v548 = vadd.f32 0.0, %v547
        %v549 = vpop.f32.mrf.mxu0
        %v550 = vadd.f32 0.0, %v549
        %551 = vmatprep.mubr.f32.mxu0 0.0
        %v552 = vand.u32 %v336, 4294901760
        %v553 = vsub.f32 %v336, %v552
        %v554 = vand.u32 %v553, 4294901760
        %v555 = vsub.f32 %v553, %v554
        %v556 = vand.u32 %v555, 4294901760
        %557 = vmatmul.mubr.f32.gmra.mxu0 %v556
        %v558 = vpop.f32.mrf.mxu0
        %v559 = vadd.f32 0.0, %v558
        %v560 = vpop.f32.mrf.mxu0
        %v561 = vadd.f32 0.0, %v560
        %562 = vmatprep.mubr.f32.mxu0 0.0
        %v563 = vand.u32 %v339, 4294901760
        %v564 = vsub.f32 %v339, %v563
        %v565 = vand.u32 %v564, 4294901760
        %v566 = vsub.f32 %v564, %v565
        %v567 = vand.u32 %v566, 4294901760
        %568 = vmatmul.mubr.f32.gmra.mxu0 %v567
        %v569 = vpop.f32.mrf.mxu0
        %v570 = vadd.f32 0.0, %v569
        %v571 = vpop.f32.mrf.mxu0
        %v572 = vadd.f32 0.0, %v571
        %573 = vmatprep.mubr.f32.mxu0 0.0
        %v574 = vand.u32 %v342, 4294901760
        %v575 = vsub.f32 %v342, %v574
        %v576 = vand.u32 %v575, 4294901760
        %v577 = vsub.f32 %v575, %v576
        %v578 = vand.u32 %v577, 4294901760
        %579 = vmatmul.mubr.f32.gmra.mxu0 %v578
        %v580 = vpop.f32.mrf.mxu0
        %v581 = vadd.f32 0.0, %v580
        %v582 = vpop.f32.mrf.mxu0
        %v583 = vadd.f32 0.0, %v582
        %584 = vmatprep.mubr.f32.mxu0 0.0
        %v585 = vand.u32 %v345, 4294901760
        %v586 = vsub.f32 %v345, %v585
        %v587 = vand.u32 %v586, 4294901760
        %v588 = vsub.f32 %v586, %v587
        %v589 = vand.u32 %v588, 4294901760
        %590 = vmatmul.mubr.f32.gmra.mxu0 %v589
        %v591 = vpop.f32.mrf.mxu0
        %v592 = vadd.f32 0.0, %v591
        %v593 = vpop.f32.mrf.mxu0
        %v594 = vadd.f32 0.0, %v593
        %595 = vmatprep.mubr.f32.mxu0 0.0
        %v596 = vand.u32 %v348, 4294901760
        %v597 = vsub.f32 %v348, %v596
        %v598 = vand.u32 %v597, 4294901760
        %v599 = vsub.f32 %v597, %v598
        %v600 = vand.u32 %v599, 4294901760
        %601 = vmatmul.mubr.f32.gmra.mxu0 %v600
        %v602 = vpop.f32.mrf.mxu0
        %v603 = vadd.f32 0.0, %v602
        %v604 = vpop.f32.mrf.mxu0
        %v605 = vadd.f32 0.0, %v604
        %606 = vdwg.mxu0
        %607 = vmatprep.subr.mxu0 0.0
        %608 = vmatpush1.msra.mxu0 0.0
        %609 = vmatprep.subr.mxu0 0.0
        %610 = vmatpush1.msra.mxu0 0.0
        %611 = vmatprep.subr.mxu0 0.0
        %612 = vmatpush1.msra.mxu0 0.0
        %613 = vmatprep.subr.mxu0 0.0
        %614 = vmatpush1.msra.mxu0 0.0
        %615 = vmatprep.subr.mxu0 0.0
        %616 = vmatpush1.msra.mxu0 0.0
        %617 = vmatprep.subr.mxu0 0.0
        %618 = vmatpush1.msra.mxu0 0.0
        %619 = vmatprep.subr.mxu0 0.0
        %620 = vmatpush1.msra.mxu0 0.0
        %621 = vmatprep.subr.mxu0 0.0
        %622 = vmatpush1.msra.mxu0 0.0
        %v623 = vand.u32 %v300, 4294901760
        %v624 = vsub.f32 %v300, %v623
        %v625 = vand.u32 %v624, 4294901760
        %v626 = vsub.f32 %v624, %v625
        %v627 = vand.u32 %v626, 4294901760
        %628 = vmatprep.subr.mxu0 %v627
        %v629 = vand.u32 %v299, 4294901760
        %v630 = vsub.f32 %v299, %v629
        %v631 = vand.u32 %v630, 4294901760
        %v632 = vsub.f32 %v630, %v631
        %v633 = vand.u32 %v632, 4294901760
        %634 = vmatpush1.msra.mxu0 %v633
        %v635 = vand.u32 %v298, 4294901760
        %v636 = vsub.f32 %v298, %v635
        %v637 = vand.u32 %v636, 4294901760
        %v638 = vsub.f32 %v636, %v637
        %v639 = vand.u32 %v638, 4294901760
        %640 = vmatprep.subr.mxu0 %v639
        %v641 = vand.u32 %v297, 4294901760
        %v642 = vsub.f32 %v297, %v641
        %v643 = vand.u32 %v642, 4294901760
        %v644 = vsub.f32 %v642, %v643
        %v645 = vand.u32 %v644, 4294901760
        %646 = vmatpush1.msra.mxu0 %v645
        %v647 = vand.u32 %v296, 4294901760
        %v648 = vsub.f32 %v296, %v647
        %v649 = vand.u32 %v648, 4294901760
        %v650 = vsub.f32 %v648, %v649
        %v651 = vand.u32 %v650, 4294901760
        %652 = vmatprep.subr.mxu0 %v651
        %v653 = vand.u32 %v295, 4294901760
        %v654 = vsub.f32 %v295, %v653
        %v655 = vand.u32 %v654, 4294901760
        %v656 = vsub.f32 %v654, %v655
        %v657 = vand.u32 %v656, 4294901760
        %658 = vmatpush1.msra.mxu0 %v657
        %v659 = vand.u32 %v294, 4294901760
        %v660 = vsub.f32 %v294, %v659
        %v661 = vand.u32 %v660, 4294901760
        %v662 = vsub.f32 %v660, %v661
        %v663 = vand.u32 %v662, 4294901760
        %664 = vmatprep.subr.mxu0 %v663
        %v665 = vand.u32 %v293, 4294901760
        %v666 = vsub.f32 %v293, %v665
        %v667 = vand.u32 %v666, 4294901760
        %v668 = vsub.f32 %v666, %v667
        %v669 = vand.u32 %v668, 4294901760
        %670 = vmatpush1.msra.mxu0 %v669
        %v671 = vand.u32 %v292, 4294901760
        %v672 = vsub.f32 %v292, %v671
        %v673 = vand.u32 %v672, 4294901760
        %v674 = vsub.f32 %v672, %v673
        %v675 = vand.u32 %v674, 4294901760
        %676 = vmatprep.subr.mxu0 %v675
        %v677 = vand.u32 %v291, 4294901760
        %v678 = vsub.f32 %v291, %v677
        %v679 = vand.u32 %v678, 4294901760
        %v680 = vsub.f32 %v678, %v679
        %v681 = vand.u32 %v680, 4294901760
        %682 = vmatpush1.msra.mxu0 %v681
        %v683 = vand.u32 %v290, 4294901760
        %v684 = vsub.f32 %v290, %v683
        %v685 = vand.u32 %v684, 4294901760
        %v686 = vsub.f32 %v684, %v685
        %v687 = vand.u32 %v686, 4294901760
        %688 = vmatprep.subr.mxu0 %v687
        %v689 = vand.u32 %v289, 4294901760
        %v690 = vsub.f32 %v289, %v689
        %v691 = vand.u32 %v690, 4294901760
        %v692 = vsub.f32 %v690, %v691
        %v693 = vand.u32 %v692, 4294901760
        %694 = vmatpush1.msra.mxu0 %v693
        %v695 = vand.u32 %v288, 4294901760
        %v696 = vsub.f32 %v288, %v695
        %v697 = vand.u32 %v696, 4294901760
        %v698 = vsub.f32 %v696, %v697
        %v699 = vand.u32 %v698, 4294901760
        %700 = vmatprep.subr.mxu0 %v699
        %v701 = vand.u32 %v287, 4294901760
        %v702 = vsub.f32 %v287, %v701
        %v703 = vand.u32 %v702, 4294901760
        %v704 = vsub.f32 %v702, %v703
        %v705 = vand.u32 %v704, 4294901760
        %706 = vmatpush1.msra.mxu0 %v705
        %v707 = vand.u32 %v286, 4294901760
        %v708 = vsub.f32 %v286, %v707
        %v709 = vand.u32 %v708, 4294901760
        %v710 = vsub.f32 %v708, %v709
        %v711 = vand.u32 %v710, 4294901760
        %712 = vmatprep.subr.mxu0 %v711
        %v713 = vand.u32 %v285, 4294901760
        %v714 = vsub.f32 %v285, %v713
        %v715 = vand.u32 %v714, 4294901760
        %v716 = vsub.f32 %v714, %v715
        %v717 = vand.u32 %v716, 4294901760
        %718 = vmatpush1.msra.mxu0 %v717
        %719 = vmatprep.subr.mxu0 0.0
        %720 = vmatpush2.msra.mxu0 0.0
        %721 = vmatprep.subr.mxu0 0.0
        %722 = vmatpush2.msra.mxu0 0.0
        %723 = vmatprep.subr.mxu0 0.0
        %724 = vmatpush2.msra.mxu0 0.0
        %725 = vmatprep.subr.mxu0 0.0
        %726 = vmatpush2.msra.mxu0 0.0
        %727 = vmatprep.subr.mxu0 0.0
        %728 = vmatpush2.msra.mxu0 0.0
        %729 = vmatprep.subr.mxu0 0.0
        %730 = vmatpush2.msra.mxu0 0.0
        %731 = vmatprep.subr.mxu0 0.0
        %732 = vmatpush2.msra.mxu0 0.0
        %733 = vmatprep.subr.mxu0 0.0
        %734 = vmatpush2.msra.mxu0 0.0
        %735 = vmatprep.subr.mxu0 0.0
        %736 = vmatpush2.msra.mxu0 0.0
        %737 = vmatprep.subr.mxu0 0.0
        %738 = vmatpush2.msra.mxu0 0.0
        %739 = vmatprep.subr.mxu0 0.0
        %740 = vmatpush2.msra.mxu0 0.0
        %741 = vmatprep.subr.mxu0 0.0
        %742 = vmatpush2.msra.mxu0 0.0
        %743 = vmatprep.subr.mxu0 0.0
        %744 = vmatpush2.msra.mxu0 0.0
        %745 = vmatprep.subr.mxu0 0.0
        %746 = vmatpush2.msra.mxu0 0.0
        %747 = vmatprep.subr.mxu0 0.0
        %748 = vmatpush2.msra.mxu0 0.0
        %749 = vmatprep.subr.mxu0 0.0
        %750 = vmatpush2.msra.mxu0 0.0
        %751 = vmatprep.mubr.f32.mxu0 0.0
        %v752 = vand.u32 %v303, 4294901760
        %753 = vmatmul.mubr.f32.gmra.mxu0 %v752
        %v754 = vpop.f32.mrf.mxu0
        %v755 = vadd.f32 %v438, %v754
        %v756 = vpop.f32.mrf.mxu0
        %v757 = vadd.f32 %v440, %v756
        %758 = vmatprep.mubr.f32.mxu0 0.0
        %v759 = vand.u32 %v306, 4294901760
        %760 = vmatmul.mubr.f32.gmra.mxu0 %v759
        %v761 = vpop.f32.mrf.mxu0
        %v762 = vadd.f32 %v449, %v761
        %v763 = vpop.f32.mrf.mxu0
        %v764 = vadd.f32 %v451, %v763
        %765 = vmatprep.mubr.f32.mxu0 0.0
        %v766 = vand.u32 %v309, 4294901760
        %767 = vmatmul.mubr.f32.gmra.mxu0 %v766
        %v768 = vpop.f32.mrf.mxu0
        %v769 = vadd.f32 %v460, %v768
        %v770 = vpop.f32.mrf.mxu0
        %v771 = vadd.f32 %v462, %v770
        %772 = vmatprep.mubr.f32.mxu0 0.0
        %v773 = vand.u32 %v312, 4294901760
        %774 = vmatmul.mubr.f32.gmra.mxu0 %v773
        %v775 = vpop.f32.mrf.mxu0
        %v776 = vadd.f32 %v471, %v775
        %v777 = vpop.f32.mrf.mxu0
        %v778 = vadd.f32 %v473, %v777
        %779 = vmatprep.mubr.f32.mxu0 0.0
        %v780 = vand.u32 %v315, 4294901760
        %781 = vmatmul.mubr.f32.gmra.mxu0 %v780
        %v782 = vpop.f32.mrf.mxu0
        %v783 = vadd.f32 %v482, %v782
        %v784 = vpop.f32.mrf.mxu0
        %v785 = vadd.f32 %v484, %v784
        %786 = vmatprep.mubr.f32.mxu0 0.0
        %v787 = vand.u32 %v318, 4294901760
        %788 = vmatmul.mubr.f32.gmra.mxu0 %v787
        %v789 = vpop.f32.mrf.mxu0
        %v790 = vadd.f32 %v493, %v789
        %v791 = vpop.f32.mrf.mxu0
        %v792 = vadd.f32 %v495, %v791
        %793 = vmatprep.mubr.f32.mxu0 0.0
        %v794 = vand.u32 %v321, 4294901760
        %795 = vmatmul.mubr.f32.gmra.mxu0 %v794
        %v796 = vpop.f32.mrf.mxu0
        %v797 = vadd.f32 %v504, %v796
        %v798 = vpop.f32.mrf.mxu0
        %v799 = vadd.f32 %v506, %v798
        %800 = vmatprep.mubr.f32.mxu0 0.0
        %v801 = vand.u32 %v324, 4294901760
        %802 = vmatmul.mubr.f32.gmra.mxu0 %v801
        %v803 = vpop.f32.mrf.mxu0
        %v804 = vadd.f32 %v515, %v803
        %v805 = vpop.f32.mrf.mxu0
        %v806 = vadd.f32 %v517, %v805
        %807 = vmatprep.mubr.f32.mxu0 0.0
        %v808 = vand.u32 %v327, 4294901760
        %809 = vmatmul.mubr.f32.gmra.mxu0 %v808
        %v810 = vpop.f32.mrf.mxu0
        %v811 = vadd.f32 %v526, %v810
        %v812 = vpop.f32.mrf.mxu0
        %v813 = vadd.f32 %v528, %v812
        %814 = vmatprep.mubr.f32.mxu0 0.0
        %v815 = vand.u32 %v330, 4294901760
        %816 = vmatmul.mubr.f32.gmra.mxu0 %v815
        %v817 = vpop.f32.mrf.mxu0
        %v818 = vadd.f32 %v537, %v817
        %v819 = vpop.f32.mrf.mxu0
        %v820 = vadd.f32 %v539, %v819
        %821 = vmatprep.mubr.f32.mxu0 0.0
        %v822 = vand.u32 %v333, 4294901760
        %823 = vmatmul.mubr.f32.gmra.mxu0 %v822
        %v824 = vpop.f32.mrf.mxu0
        %v825 = vadd.f32 %v548, %v824
        %v826 = vpop.f32.mrf.mxu0
        %v827 = vadd.f32 %v550, %v826
        %828 = vmatprep.mubr.f32.mxu0 0.0
        %v829 = vand.u32 %v336, 4294901760
        %830 = vmatmul.mubr.f32.gmra.mxu0 %v829
        %v831 = vpop.f32.mrf.mxu0
        %v832 = vadd.f32 %v559, %v831
        %v833 = vpop.f32.mrf.mxu0
        %v834 = vadd.f32 %v561, %v833
        %835 = vmatprep.mubr.f32.mxu0 0.0
        %v836 = vand.u32 %v339, 4294901760
        %837 = vmatmul.mubr.f32.gmra.mxu0 %v836
        %v838 = vpop.f32.mrf.mxu0
        %v839 = vadd.f32 %v570, %v838
        %v840 = vpop.f32.mrf.mxu0
        %v841 = vadd.f32 %v572, %v840
        %842 = vmatprep.mubr.f32.mxu0 0.0
        %v843 = vand.u32 %v342, 4294901760
        %844 = vmatmul.mubr.f32.gmra.mxu0 %v843
        %v845 = vpop.f32.mrf.mxu0
        %v846 = vadd.f32 %v581, %v845
        %v847 = vpop.f32.mrf.mxu0
        %v848 = vadd.f32 %v583, %v847
        %849 = vmatprep.mubr.f32.mxu0 0.0
        %v850 = vand.u32 %v345, 4294901760
        %851 = vmatmul.mubr.f32.gmra.mxu0 %v850
        %v852 = vpop.f32.mrf.mxu0
        %v853 = vadd.f32 %v592, %v852
        %v854 = vpop.f32.mrf.mxu0
        %v855 = vadd.f32 %v594, %v854
        %856 = vmatprep.mubr.f32.mxu0 0.0
        %v857 = vand.u32 %v348, 4294901760
        %858 = vmatmul.mubr.f32.gmra.mxu0 %v857
        %v859 = vpop.f32.mrf.mxu0
        %v860 = vadd.f32 %v603, %v859
        %v861 = vpop.f32.mrf.mxu0
        %v862 = vadd.f32 %v605, %v861
        %863 = vdwg.mxu0
        %864 = vmatprep.subr.mxu0 0.0
        %865 = vmatpush1.msra.mxu0 0.0
        %866 = vmatprep.subr.mxu0 0.0
        %867 = vmatpush1.msra.mxu0 0.0
        %868 = vmatprep.subr.mxu0 0.0
        %869 = vmatpush1.msra.mxu0 0.0
        %870 = vmatprep.subr.mxu0 0.0
        %871 = vmatpush1.msra.mxu0 0.0
        %872 = vmatprep.subr.mxu0 0.0
        %873 = vmatpush1.msra.mxu0 0.0
        %874 = vmatprep.subr.mxu0 0.0
        %875 = vmatpush1.msra.mxu0 0.0
        %876 = vmatprep.subr.mxu0 0.0
        %877 = vmatpush1.msra.mxu0 0.0
        %878 = vmatprep.subr.mxu0 0.0
        %879 = vmatpush1.msra.mxu0 0.0
        %v880 = vand.u32 %v300, 4294901760
        %v881 = vsub.f32 %v300, %v880
        %882 = vmatprep.subr.mxu0 %v881
        %v883 = vand.u32 %v299, 4294901760
        %v884 = vsub.f32 %v299, %v883
        %885 = vmatpush1.msra.mxu0 %v884
        %v886 = vand.u32 %v298, 4294901760
        %v887 = vsub.f32 %v298, %v886
        %888 = vmatprep.subr.mxu0 %v887
        %v889 = vand.u32 %v297, 4294901760
        %v890 = vsub.f32 %v297, %v889
        %891 = vmatpush1.msra.mxu0 %v890
        %v892 = vand.u32 %v296, 4294901760
        %v893 = vsub.f32 %v296, %v892
        %894 = vmatprep.subr.mxu0 %v893
        %v895 = vand.u32 %v295, 4294901760
        %v896 = vsub.f32 %v295, %v895
        %897 = vmatpush1.msra.mxu0 %v896
        %v898 = vand.u32 %v294, 4294901760
        %v899 = vsub.f32 %v294, %v898
        %900 = vmatprep.subr.mxu0 %v899
        %v901 = vand.u32 %v293, 4294901760
        %v902 = vsub.f32 %v293, %v901
        %903 = vmatpush1.msra.mxu0 %v902
        %v904 = vand.u32 %v292, 4294901760
        %v905 = vsub.f32 %v292, %v904
        %906 = vmatprep.subr.mxu0 %v905
        %v907 = vand.u32 %v291, 4294901760
        %v908 = vsub.f32 %v291, %v907
        %909 = vmatpush1.msra.mxu0 %v908
        %v910 = vand.u32 %v290, 4294901760
        %v911 = vsub.f32 %v290, %v910
        %912 = vmatprep.subr.mxu0 %v911
        %v913 = vand.u32 %v289, 4294901760
        %v914 = vsub.f32 %v289, %v913
        %915 = vmatpush1.msra.mxu0 %v914
        %v916 = vand.u32 %v288, 4294901760
        %v917 = vsub.f32 %v288, %v916
        %918 = vmatprep.subr.mxu0 %v917
        %v919 = vand.u32 %v287, 4294901760
        %v920 = vsub.f32 %v287, %v919
        %921 = vmatpush1.msra.mxu0 %v920
        %v922 = vand.u32 %v286, 4294901760
        %v923 = vsub.f32 %v286, %v922
        %924 = vmatprep.subr.mxu0 %v923
        %v925 = vand.u32 %v285, 4294901760
        %v926 = vsub.f32 %v285, %v925
        %927 = vmatpush1.msra.mxu0 %v926
        %928 = vmatprep.subr.mxu0 0.0
        %929 = vmatpush2.msra.mxu0 0.0
        %930 = vmatprep.subr.mxu0 0.0
        %931 = vmatpush2.msra.mxu0 0.0
        %932 = vmatprep.subr.mxu0 0.0
        %933 = vmatpush2.msra.mxu0 0.0
        %934 = vmatprep.subr.mxu0 0.0
        %935 = vmatpush2.msra.mxu0 0.0
        %936 = vmatprep.subr.mxu0 0.0
        %937 = vmatpush2.msra.mxu0 0.0
        %938 = vmatprep.subr.mxu0 0.0
        %939 = vmatpush2.msra.mxu0 0.0
        %940 = vmatprep.subr.mxu0 0.0
        %941 = vmatpush2.msra.mxu0 0.0
        %942 = vmatprep.subr.mxu0 0.0
        %943 = vmatpush2.msra.mxu0 0.0
        %944 = vmatprep.subr.mxu0 0.0
        %945 = vmatpush2.msra.mxu0 0.0
        %946 = vmatprep.subr.mxu0 0.0
        %947 = vmatpush2.msra.mxu0 0.0
        %948 = vmatprep.subr.mxu0 0.0
        %949 = vmatpush2.msra.mxu0 0.0
        %950 = vmatprep.subr.mxu0 0.0
        %951 = vmatpush2.msra.mxu0 0.0
        %952 = vmatprep.subr.mxu0 0.0
        %953 = vmatpush2.msra.mxu0 0.0
        %954 = vmatprep.subr.mxu0 0.0
        %955 = vmatpush2.msra.mxu0 0.0
        %956 = vmatprep.subr.mxu0 0.0
        %957 = vmatpush2.msra.mxu0 0.0
        %958 = vmatprep.subr.mxu0 0.0
        %959 = vmatpush2.msra.mxu0 0.0
        %960 = vmatprep.mubr.f32.mxu0 0.0
        %v961 = vand.u32 %v303, 4294901760
        %v962 = vsub.f32 %v303, %v961
        %963 = vmatmul.mubr.f32.gmra.mxu0 %v962
        %v964 = vpop.f32.mrf.mxu0
        %v965 = vadd.f32 %v755, %v964
        %v966 = vpop.f32.mrf.mxu0
        %v967 = vadd.f32 %v757, %v966
        %968 = vmatprep.mubr.f32.mxu0 0.0
        %v969 = vand.u32 %v306, 4294901760
        %v970 = vsub.f32 %v306, %v969
        %971 = vmatmul.mubr.f32.gmra.mxu0 %v970
        %v972 = vpop.f32.mrf.mxu0
        %v973 = vadd.f32 %v762, %v972
        %v974 = vpop.f32.mrf.mxu0
        %v975 = vadd.f32 %v764, %v974
        %976 = vmatprep.mubr.f32.mxu0 0.0
        %v977 = vand.u32 %v309, 4294901760
        %v978 = vsub.f32 %v309, %v977
        %979 = vmatmul.mubr.f32.gmra.mxu0 %v978
        %v980 = vpop.f32.mrf.mxu0
        %v981 = vadd.f32 %v769, %v980
        %v982 = vpop.f32.mrf.mxu0
        %v983 = vadd.f32 %v771, %v982
        %984 = vmatprep.mubr.f32.mxu0 0.0
        %v985 = vand.u32 %v312, 4294901760
        %v986 = vsub.f32 %v312, %v985
        %987 = vmatmul.mubr.f32.gmra.mxu0 %v986
        %v988 = vpop.f32.mrf.mxu0
        %v989 = vadd.f32 %v776, %v988
        %v990 = vpop.f32.mrf.mxu0
        %v991 = vadd.f32 %v778, %v990
        %992 = vmatprep.mubr.f32.mxu0 0.0
        %v993 = vand.u32 %v315, 4294901760
        %v994 = vsub.f32 %v315, %v993
        %995 = vmatmul.mubr.f32.gmra.mxu0 %v994
        %v996 = vpop.f32.mrf.mxu0
        %v997 = vadd.f32 %v783, %v996
        %v998 = vpop.f32.mrf.mxu0
        %v999 = vadd.f32 %v785, %v998
        %1000 = vmatprep.mubr.f32.mxu0 0.0
        %v1001 = vand.u32 %v318, 4294901760
        %v1002 = vsub.f32 %v318, %v1001
        %1003 = vmatmul.mubr.f32.gmra.mxu0 %v1002
        %v1004 = vpop.f32.mrf.mxu0
        %v1005 = vadd.f32 %v790, %v1004
        %v1006 = vpop.f32.mrf.mxu0
        %v1007 = vadd.f32 %v792, %v1006
        %1008 = vmatprep.mubr.f32.mxu0 0.0
        %v1009 = vand.u32 %v321, 4294901760
        %v1010 = vsub.f32 %v321, %v1009
        %1011 = vmatmul.mubr.f32.gmra.mxu0 %v1010
        %v1012 = vpop.f32.mrf.mxu0
        %v1013 = vadd.f32 %v797, %v1012
        %v1014 = vpop.f32.mrf.mxu0
        %v1015 = vadd.f32 %v799, %v1014
        %1016 = vmatprep.mubr.f32.mxu0 0.0
        %v1017 = vand.u32 %v324, 4294901760
        %v1018 = vsub.f32 %v324, %v1017
        %1019 = vmatmul.mubr.f32.gmra.mxu0 %v1018
        %v1020 = vpop.f32.mrf.mxu0
        %v1021 = vadd.f32 %v804, %v1020
        %v1022 = vpop.f32.mrf.mxu0
        %v1023 = vadd.f32 %v806, %v1022
        %1024 = vmatprep.mubr.f32.mxu0 0.0
        %v1025 = vand.u32 %v327, 4294901760
        %v1026 = vsub.f32 %v327, %v1025
        %1027 = vmatmul.mubr.f32.gmra.mxu0 %v1026
        %v1028 = vpop.f32.mrf.mxu0
        %v1029 = vadd.f32 %v811, %v1028
        %v1030 = vpop.f32.mrf.mxu0
        %v1031 = vadd.f32 %v813, %v1030
        %1032 = vmatprep.mubr.f32.mxu0 0.0
        %v1033 = vand.u32 %v330, 4294901760
        %v1034 = vsub.f32 %v330, %v1033
        %1035 = vmatmul.mubr.f32.gmra.mxu0 %v1034
        %v1036 = vpop.f32.mrf.mxu0
        %v1037 = vadd.f32 %v818, %v1036
        %v1038 = vpop.f32.mrf.mxu0
        %v1039 = vadd.f32 %v820, %v1038
        %1040 = vmatprep.mubr.f32.mxu0 0.0
        %v1041 = vand.u32 %v333, 4294901760
        %v1042 = vsub.f32 %v333, %v1041
        %1043 = vmatmul.mubr.f32.gmra.mxu0 %v1042
        %v1044 = vpop.f32.mrf.mxu0
        %v1045 = vadd.f32 %v825, %v1044
        %v1046 = vpop.f32.mrf.mxu0
        %v1047 = vadd.f32 %v827, %v1046
        %1048 = vmatprep.mubr.f32.mxu0 0.0
        %v1049 = vand.u32 %v336, 4294901760
        %v1050 = vsub.f32 %v336, %v1049
        %1051 = vmatmul.mubr.f32.gmra.mxu0 %v1050
        %v1052 = vpop.f32.mrf.mxu0
        %v1053 = vadd.f32 %v832, %v1052
        %v1054 = vpop.f32.mrf.mxu0
        %v1055 = vadd.f32 %v834, %v1054
        %1056 = vmatprep.mubr.f32.mxu0 0.0
        %v1057 = vand.u32 %v339, 4294901760
        %v1058 = vsub.f32 %v339, %v1057
        %1059 = vmatmul.mubr.f32.gmra.mxu0 %v1058
        %v1060 = vpop.f32.mrf.mxu0
        %v1061 = vadd.f32 %v839, %v1060
        %v1062 = vpop.f32.mrf.mxu0
        %v1063 = vadd.f32 %v841, %v1062
        %1064 = vmatprep.mubr.f32.mxu0 0.0
        %v1065 = vand.u32 %v342, 4294901760
        %v1066 = vsub.f32 %v342, %v1065
        %1067 = vmatmul.mubr.f32.gmra.mxu0 %v1066
        %v1068 = vpop.f32.mrf.mxu0
        %v1069 = vadd.f32 %v846, %v1068
        %v1070 = vpop.f32.mrf.mxu0
        %v1071 = vadd.f32 %v848, %v1070
        %1072 = vmatprep.mubr.f32.mxu0 0.0
        %v1073 = vand.u32 %v345, 4294901760
        %v1074 = vsub.f32 %v345, %v1073
        %1075 = vmatmul.mubr.f32.gmra.mxu0 %v1074
        %v1076 = vpop.f32.mrf.mxu0
        %v1077 = vadd.f32 %v853, %v1076
        %v1078 = vpop.f32.mrf.mxu0
        %v1079 = vadd.f32 %v855, %v1078
        %1080 = vmatprep.mubr.f32.mxu0 0.0
        %v1081 = vand.u32 %v348, 4294901760
        %v1082 = vsub.f32 %v348, %v1081
        %1083 = vmatmul.mubr.f32.gmra.mxu0 %v1082
        %v1084 = vpop.f32.mrf.mxu0
        %v1085 = vadd.f32 %v860, %v1084
        %v1086 = vpop.f32.mrf.mxu0
        %v1087 = vadd.f32 %v862, %v1086
        %1088 = vdwg.mxu0
        %1089 = vmatprep.subr.mxu0 0.0
        %1090 = vmatpush1.msra.mxu0 0.0
        %1091 = vmatprep.subr.mxu0 0.0
        %1092 = vmatpush1.msra.mxu0 0.0
        %1093 = vmatprep.subr.mxu0 0.0
        %1094 = vmatpush1.msra.mxu0 0.0
        %1095 = vmatprep.subr.mxu0 0.0
        %1096 = vmatpush1.msra.mxu0 0.0
        %1097 = vmatprep.subr.mxu0 0.0
        %1098 = vmatpush1.msra.mxu0 0.0
        %1099 = vmatprep.subr.mxu0 0.0
        %1100 = vmatpush1.msra.mxu0 0.0
        %1101 = vmatprep.subr.mxu0 0.0
        %1102 = vmatpush1.msra.mxu0 0.0
        %1103 = vmatprep.subr.mxu0 0.0
        %1104 = vmatpush1.msra.mxu0 0.0
        %v1105 = vand.u32 %v300, 4294901760
        %1106 = vmatprep.subr.mxu0 %v1105
        %v1107 = vand.u32 %v299, 4294901760
        %1108 = vmatpush1.msra.mxu0 %v1107
        %v1109 = vand.u32 %v298, 4294901760
        %1110 = vmatprep.subr.mxu0 %v1109
        %v1111 = vand.u32 %v297, 4294901760
        %1112 = vmatpush1.msra.mxu0 %v1111
        %v1113 = vand.u32 %v296, 4294901760
        %1114 = vmatprep.subr.mxu0 %v1113
        %v1115 = vand.u32 %v295, 4294901760
        %1116 = vmatpush1.msra.mxu0 %v1115
        %v1117 = vand.u32 %v294, 4294901760
        %1118 = vmatprep.subr.mxu0 %v1117
        %v1119 = vand.u32 %v293, 4294901760
        %1120 = vmatpush1.msra.mxu0 %v1119
        %v1121 = vand.u32 %v292, 4294901760
        %1122 = vmatprep.subr.mxu0 %v1121
        %v1123 = vand.u32 %v291, 4294901760
        %1124 = vmatpush1.msra.mxu0 %v1123
        %v1125 = vand.u32 %v290, 4294901760
        %1126 = vmatprep.subr.mxu0 %v1125
        %v1127 = vand.u32 %v289, 4294901760
        %1128 = vmatpush1.msra.mxu0 %v1127
        %v1129 = vand.u32 %v288, 4294901760
        %1130 = vmatprep.subr.mxu0 %v1129
        %v1131 = vand.u32 %v287, 4294901760
        %1132 = vmatpush1.msra.mxu0 %v1131
        %v1133 = vand.u32 %v286, 4294901760
        %1134 = vmatprep.subr.mxu0 %v1133
        %v1135 = vand.u32 %v285, 4294901760
        %1136 = vmatpush1.msra.mxu0 %v1135
        %1137 = vmatprep.subr.mxu0 0.0
        %1138 = vmatpush2.msra.mxu0 0.0
        %1139 = vmatprep.subr.mxu0 0.0
        %1140 = vmatpush2.msra.mxu0 0.0
        %1141 = vmatprep.subr.mxu0 0.0
        %1142 = vmatpush2.msra.mxu0 0.0
        %1143 = vmatprep.subr.mxu0 0.0
        %1144 = vmatpush2.msra.mxu0 0.0
        %1145 = vmatprep.subr.mxu0 0.0
        %1146 = vmatpush2.msra.mxu0 0.0
        %1147 = vmatprep.subr.mxu0 0.0
        %1148 = vmatpush2.msra.mxu0 0.0
        %1149 = vmatprep.subr.mxu0 0.0
        %1150 = vmatpush2.msra.mxu0 0.0
        %1151 = vmatprep.subr.mxu0 0.0
        %1152 = vmatpush2.msra.mxu0 0.0
        %1153 = vmatprep.subr.mxu0 0.0
        %1154 = vmatpush2.msra.mxu0 0.0
        %1155 = vmatprep.subr.mxu0 0.0
        %1156 = vmatpush2.msra.mxu0 0.0
        %1157 = vmatprep.subr.mxu0 0.0
        %1158 = vmatpush2.msra.mxu0 0.0
        %1159 = vmatprep.subr.mxu0 0.0
        %1160 = vmatpush2.msra.mxu0 0.0
        %1161 = vmatprep.subr.mxu0 0.0
        %1162 = vmatpush2.msra.mxu0 0.0
        %1163 = vmatprep.subr.mxu0 0.0
        %1164 = vmatpush2.msra.mxu0 0.0
        %1165 = vmatprep.subr.mxu0 0.0
        %1166 = vmatpush2.msra.mxu0 0.0
        %1167 = vmatprep.subr.mxu0 0.0
        %1168 = vmatpush2.msra.mxu0 0.0
        %1169 = vmatprep.mubr.f32.mxu0 0.0
        %v1170 = vand.u32 %v303, 4294901760
        %v1171 = vsub.f32 %v303, %v1170
        %v1172 = vand.u32 %v1171, 4294901760
        %1173 = vmatmul.mubr.f32.gmra.mxu0 %v1172
        %v1174 = vpop.f32.mrf.mxu0
        %v1175 = vadd.f32 %v965, %v1174
        %v1176 = vpop.f32.mrf.mxu0
        %v1177 = vadd.f32 %v967, %v1176
        %1178 = vmatprep.mubr.f32.mxu0 0.0
        %v1179 = vand.u32 %v306, 4294901760
        %v1180 = vsub.f32 %v306, %v1179
        %v1181 = vand.u32 %v1180, 4294901760
        %1182 = vmatmul.mubr.f32.gmra.mxu0 %v1181
        %v1183 = vpop.f32.mrf.mxu0
        %v1184 = vadd.f32 %v973, %v1183
        %v1185 = vpop.f32.mrf.mxu0
        %v1186 = vadd.f32 %v975, %v1185
        %1187 = vmatprep.mubr.f32.mxu0 0.0
        %v1188 = vand.u32 %v309, 4294901760
        %v1189 = vsub.f32 %v309, %v1188
        %v1190 = vand.u32 %v1189, 4294901760
        %1191 = vmatmul.mubr.f32.gmra.mxu0 %v1190
        %v1192 = vpop.f32.mrf.mxu0
        %v1193 = vadd.f32 %v981, %v1192
        %v1194 = vpop.f32.mrf.mxu0
        %v1195 = vadd.f32 %v983, %v1194
        %1196 = vmatprep.mubr.f32.mxu0 0.0
        %v1197 = vand.u32 %v312, 4294901760
        %v1198 = vsub.f32 %v312, %v1197
        %v1199 = vand.u32 %v1198, 4294901760
        %1200 = vmatmul.mubr.f32.gmra.mxu0 %v1199
        %v1201 = vpop.f32.mrf.mxu0
        %v1202 = vadd.f32 %v989, %v1201
        %v1203 = vpop.f32.mrf.mxu0
        %v1204 = vadd.f32 %v991, %v1203
        %1205 = vmatprep.mubr.f32.mxu0 0.0
        %v1206 = vand.u32 %v315, 4294901760
        %v1207 = vsub.f32 %v315, %v1206
        %v1208 = vand.u32 %v1207, 4294901760
        %1209 = vmatmul.mubr.f32.gmra.mxu0 %v1208
        %v1210 = vpop.f32.mrf.mxu0
        %v1211 = vadd.f32 %v997, %v1210
        %v1212 = vpop.f32.mrf.mxu0
        %v1213 = vadd.f32 %v999, %v1212
        %1214 = vmatprep.mubr.f32.mxu0 0.0
        %v1215 = vand.u32 %v318, 4294901760
        %v1216 = vsub.f32 %v318, %v1215
        %v1217 = vand.u32 %v1216, 4294901760
        %1218 = vmatmul.mubr.f32.gmra.mxu0 %v1217
        %v1219 = vpop.f32.mrf.mxu0
        %v1220 = vadd.f32 %v1005, %v1219
        %v1221 = vpop.f32.mrf.mxu0
        %v1222 = vadd.f32 %v1007, %v1221
        %1223 = vmatprep.mubr.f32.mxu0 0.0
        %v1224 = vand.u32 %v321, 4294901760
        %v1225 = vsub.f32 %v321, %v1224
        %v1226 = vand.u32 %v1225, 4294901760
        %1227 = vmatmul.mubr.f32.gmra.mxu0 %v1226
        %v1228 = vpop.f32.mrf.mxu0
        %v1229 = vadd.f32 %v1013, %v1228
        %v1230 = vpop.f32.mrf.mxu0
        %v1231 = vadd.f32 %v1015, %v1230
        %1232 = vmatprep.mubr.f32.mxu0 0.0
        %v1233 = vand.u32 %v324, 4294901760
        %v1234 = vsub.f32 %v324, %v1233
        %v1235 = vand.u32 %v1234, 4294901760
        %1236 = vmatmul.mubr.f32.gmra.mxu0 %v1235
        %v1237 = vpop.f32.mrf.mxu0
        %v1238 = vadd.f32 %v1021, %v1237
        %v1239 = vpop.f32.mrf.mxu0
        %v1240 = vadd.f32 %v1023, %v1239
        %1241 = vmatprep.mubr.f32.mxu0 0.0
        %v1242 = vand.u32 %v327, 4294901760
        %v1243 = vsub.f32 %v327, %v1242
        %v1244 = vand.u32 %v1243, 4294901760
        %1245 = vmatmul.mubr.f32.gmra.mxu0 %v1244
        %v1246 = vpop.f32.mrf.mxu0
        %v1247 = vadd.f32 %v1029, %v1246
        %v1248 = vpop.f32.mrf.mxu0
        %v1249 = vadd.f32 %v1031, %v1248
        %1250 = vmatprep.mubr.f32.mxu0 0.0
        %v1251 = vand.u32 %v330, 4294901760
        %v1252 = vsub.f32 %v330, %v1251
        %v1253 = vand.u32 %v1252, 4294901760
        %1254 = vmatmul.mubr.f32.gmra.mxu0 %v1253
        %v1255 = vpop.f32.mrf.mxu0
        %v1256 = vadd.f32 %v1037, %v1255
        %v1257 = vpop.f32.mrf.mxu0
        %v1258 = vadd.f32 %v1039, %v1257
        %1259 = vmatprep.mubr.f32.mxu0 0.0
        %v1260 = vand.u32 %v333, 4294901760
        %v1261 = vsub.f32 %v333, %v1260
        %v1262 = vand.u32 %v1261, 4294901760
        %1263 = vmatmul.mubr.f32.gmra.mxu0 %v1262
        %v1264 = vpop.f32.mrf.mxu0
        %v1265 = vadd.f32 %v1045, %v1264
        %v1266 = vpop.f32.mrf.mxu0
        %v1267 = vadd.f32 %v1047, %v1266
        %1268 = vmatprep.mubr.f32.mxu0 0.0
        %v1269 = vand.u32 %v336, 4294901760
        %v1270 = vsub.f32 %v336, %v1269
        %v1271 = vand.u32 %v1270, 4294901760
        %1272 = vmatmul.mubr.f32.gmra.mxu0 %v1271
        %v1273 = vpop.f32.mrf.mxu0
        %v1274 = vadd.f32 %v1053, %v1273
        %v1275 = vpop.f32.mrf.mxu0
        %v1276 = vadd.f32 %v1055, %v1275
        %1277 = vmatprep.mubr.f32.mxu0 0.0
        %v1278 = vand.u32 %v339, 4294901760
        %v1279 = vsub.f32 %v339, %v1278
        %v1280 = vand.u32 %v1279, 4294901760
        %1281 = vmatmul.mubr.f32.gmra.mxu0 %v1280
        %v1282 = vpop.f32.mrf.mxu0
        %v1283 = vadd.f32 %v1061, %v1282
        %v1284 = vpop.f32.mrf.mxu0
        %v1285 = vadd.f32 %v1063, %v1284
        %1286 = vmatprep.mubr.f32.mxu0 0.0
        %v1287 = vand.u32 %v342, 4294901760
        %v1288 = vsub.f32 %v342, %v1287
        %v1289 = vand.u32 %v1288, 4294901760
        %1290 = vmatmul.mubr.f32.gmra.mxu0 %v1289
        %v1291 = vpop.f32.mrf.mxu0
        %v1292 = vadd.f32 %v1069, %v1291
        %v1293 = vpop.f32.mrf.mxu0
        %v1294 = vadd.f32 %v1071, %v1293
        %1295 = vmatprep.mubr.f32.mxu0 0.0
        %v1296 = vand.u32 %v345, 4294901760
        %v1297 = vsub.f32 %v345, %v1296
        %v1298 = vand.u32 %v1297, 4294901760
        %1299 = vmatmul.mubr.f32.gmra.mxu0 %v1298
        %v1300 = vpop.f32.mrf.mxu0
        %v1301 = vadd.f32 %v1077, %v1300
        %v1302 = vpop.f32.mrf.mxu0
        %v1303 = vadd.f32 %v1079, %v1302
        %1304 = vmatprep.mubr.f32.mxu0 0.0
        %v1305 = vand.u32 %v348, 4294901760
        %v1306 = vsub.f32 %v348, %v1305
        %v1307 = vand.u32 %v1306, 4294901760
        %1308 = vmatmul.mubr.f32.gmra.mxu0 %v1307
        %v1309 = vpop.f32.mrf.mxu0
        %v1310 = vadd.f32 %v1085, %v1309
        %v1311 = vpop.f32.mrf.mxu0
        %v1312 = vadd.f32 %v1087, %v1311
        %1313 = vdwg.mxu0
        %1314 = vmatprep.subr.mxu0 0.0
        %1315 = vmatpush1.msra.mxu0 0.0
        %1316 = vmatprep.subr.mxu0 0.0
        %1317 = vmatpush1.msra.mxu0 0.0
        %1318 = vmatprep.subr.mxu0 0.0
        %1319 = vmatpush1.msra.mxu0 0.0
        %1320 = vmatprep.subr.mxu0 0.0
        %1321 = vmatpush1.msra.mxu0 0.0
        %1322 = vmatprep.subr.mxu0 0.0
        %1323 = vmatpush1.msra.mxu0 0.0
        %1324 = vmatprep.subr.mxu0 0.0
        %1325 = vmatpush1.msra.mxu0 0.0
        %1326 = vmatprep.subr.mxu0 0.0
        %1327 = vmatpush1.msra.mxu0 0.0
        %1328 = vmatprep.subr.mxu0 0.0
        %1329 = vmatpush1.msra.mxu0 0.0
        %v1330 = vand.u32 %v300, 4294901760
        %v1331 = vsub.f32 %v300, %v1330
        %v1332 = vand.u32 %v1331, 4294901760
        %1333 = vmatprep.subr.mxu0 %v1332
        %v1334 = vand.u32 %v299, 4294901760
        %v1335 = vsub.f32 %v299, %v1334
        %v1336 = vand.u32 %v1335, 4294901760
        %1337 = vmatpush1.msra.mxu0 %v1336
        %v1338 = vand.u32 %v298, 4294901760
        %v1339 = vsub.f32 %v298, %v1338
        %v1340 = vand.u32 %v1339, 4294901760
        %1341 = vmatprep.subr.mxu0 %v1340
        %v1342 = vand.u32 %v297, 4294901760
        %v1343 = vsub.f32 %v297, %v1342
        %v1344 = vand.u32 %v1343, 4294901760
        %1345 = vmatpush1.msra.mxu0 %v1344
        %v1346 = vand.u32 %v296, 4294901760
        %v1347 = vsub.f32 %v296, %v1346
        %v1348 = vand.u32 %v1347, 4294901760
        %1349 = vmatprep.subr.mxu0 %v1348
        %v1350 = vand.u32 %v295, 4294901760
        %v1351 = vsub.f32 %v295, %v1350
        %v1352 = vand.u32 %v1351, 4294901760
        %1353 = vmatpush1.msra.mxu0 %v1352
        %v1354 = vand.u32 %v294, 4294901760
        %v1355 = vsub.f32 %v294, %v1354
        %v1356 = vand.u32 %v1355, 4294901760
        %1357 = vmatprep.subr.mxu0 %v1356
        %v1358 = vand.u32 %v293, 4294901760
        %v1359 = vsub.f32 %v293, %v1358
        %v1360 = vand.u32 %v1359, 4294901760
        %1361 = vmatpush1.msra.mxu0 %v1360
        %v1362 = vand.u32 %v292, 4294901760
        %v1363 = vsub.f32 %v292, %v1362
        %v1364 = vand.u32 %v1363, 4294901760
        %1365 = vmatprep.subr.mxu0 %v1364
        %v1366 = vand.u32 %v291, 4294901760
        %v1367 = vsub.f32 %v291, %v1366
        %v1368 = vand.u32 %v1367, 4294901760
        %1369 = vmatpush1.msra.mxu0 %v1368
        %v1370 = vand.u32 %v290, 4294901760
        %v1371 = vsub.f32 %v290, %v1370
        %v1372 = vand.u32 %v1371, 4294901760
        %1373 = vmatprep.subr.mxu0 %v1372
        %v1374 = vand.u32 %v289, 4294901760
        %v1375 = vsub.f32 %v289, %v1374
        %v1376 = vand.u32 %v1375, 4294901760
        %1377 = vmatpush1.msra.mxu0 %v1376
        %v1378 = vand.u32 %v288, 4294901760
        %v1379 = vsub.f32 %v288, %v1378
        %v1380 = vand.u32 %v1379, 4294901760
        %1381 = vmatprep.subr.mxu0 %v1380
        %v1382 = vand.u32 %v287, 4294901760
        %v1383 = vsub.f32 %v287, %v1382
        %v1384 = vand.u32 %v1383, 4294901760
        %1385 = vmatpush1.msra.mxu0 %v1384
        %v1386 = vand.u32 %v286, 4294901760
        %v1387 = vsub.f32 %v286, %v1386
        %v1388 = vand.u32 %v1387, 4294901760
        %1389 = vmatprep.subr.mxu0 %v1388
        %v1390 = vand.u32 %v285, 4294901760
        %v1391 = vsub.f32 %v285, %v1390
        %v1392 = vand.u32 %v1391, 4294901760
        %1393 = vmatpush1.msra.mxu0 %v1392
        %1394 = vmatprep.subr.mxu0 0.0
        %1395 = vmatpush2.msra.mxu0 0.0
        %1396 = vmatprep.subr.mxu0 0.0
        %1397 = vmatpush2.msra.mxu0 0.0
        %1398 = vmatprep.subr.mxu0 0.0
        %1399 = vmatpush2.msra.mxu0 0.0
        %1400 = vmatprep.subr.mxu0 0.0
        %1401 = vmatpush2.msra.mxu0 0.0
        %1402 = vmatprep.subr.mxu0 0.0
        %1403 = vmatpush2.msra.mxu0 0.0
        %1404 = vmatprep.subr.mxu0 0.0
        %1405 = vmatpush2.msra.mxu0 0.0
        %1406 = vmatprep.subr.mxu0 0.0
        %1407 = vmatpush2.msra.mxu0 0.0
        %1408 = vmatprep.subr.mxu0 0.0
        %1409 = vmatpush2.msra.mxu0 0.0
        %1410 = vmatprep.subr.mxu0 0.0
        %1411 = vmatpush2.msra.mxu0 0.0
        %1412 = vmatprep.subr.mxu0 0.0
        %1413 = vmatpush2.msra.mxu0 0.0
        %1414 = vmatprep.subr.mxu0 0.0
        %1415 = vmatpush2.msra.mxu0 0.0
        %1416 = vmatprep.subr.mxu0 0.0
        %1417 = vmatpush2.msra.mxu0 0.0
        %1418 = vmatprep.subr.mxu0 0.0
        %1419 = vmatpush2.msra.mxu0 0.0
        %1420 = vmatprep.subr.mxu0 0.0
        %1421 = vmatpush2.msra.mxu0 0.0
        %1422 = vmatprep.subr.mxu0 0.0
        %1423 = vmatpush2.msra.mxu0 0.0
        %1424 = vmatprep.subr.mxu0 0.0
        %1425 = vmatpush2.msra.mxu0 0.0
        %1426 = vmatprep.mubr.f32.mxu0 0.0
        %v1427 = vand.u32 %v303, 4294901760
        %1428 = vmatmul.mubr.f32.gmra.mxu0 %v1427
        %v1429 = vpop.f32.mrf.mxu0
        %v1430 = vadd.f32 %v1175, %v1429
        %v1431 = vpop.f32.mrf.mxu0
        %v1432 = vadd.f32 %v1177, %v1431
        %1433 = vmatprep.mubr.f32.mxu0 0.0
        %v1434 = vand.u32 %v306, 4294901760
        %1435 = vmatmul.mubr.f32.gmra.mxu0 %v1434
        %v1436 = vpop.f32.mrf.mxu0
        %v1437 = vadd.f32 %v1184, %v1436
        %v1438 = vpop.f32.mrf.mxu0
        %v1439 = vadd.f32 %v1186, %v1438
        %1440 = vmatprep.mubr.f32.mxu0 0.0
        %v1441 = vand.u32 %v309, 4294901760
        %1442 = vmatmul.mubr.f32.gmra.mxu0 %v1441
        %v1443 = vpop.f32.mrf.mxu0
        %v1444 = vadd.f32 %v1193, %v1443
        %v1445 = vpop.f32.mrf.mxu0
        %v1446 = vadd.f32 %v1195, %v1445
        %1447 = vmatprep.mubr.f32.mxu0 0.0
        %v1448 = vand.u32 %v312, 4294901760
        %1449 = vmatmul.mubr.f32.gmra.mxu0 %v1448
        %v1450 = vpop.f32.mrf.mxu0
        %v1451 = vadd.f32 %v1202, %v1450
        %v1452 = vpop.f32.mrf.mxu0
        %v1453 = vadd.f32 %v1204, %v1452
        %1454 = vmatprep.mubr.f32.mxu0 0.0
        %v1455 = vand.u32 %v315, 4294901760
        %1456 = vmatmul.mubr.f32.gmra.mxu0 %v1455
        %v1457 = vpop.f32.mrf.mxu0
        %v1458 = vadd.f32 %v1211, %v1457
        %v1459 = vpop.f32.mrf.mxu0
        %v1460 = vadd.f32 %v1213, %v1459
        %1461 = vmatprep.mubr.f32.mxu0 0.0
        %v1462 = vand.u32 %v318, 4294901760
        %1463 = vmatmul.mubr.f32.gmra.mxu0 %v1462
        %v1464 = vpop.f32.mrf.mxu0
        %v1465 = vadd.f32 %v1220, %v1464
        %v1466 = vpop.f32.mrf.mxu0
        %v1467 = vadd.f32 %v1222, %v1466
        %1468 = vmatprep.mubr.f32.mxu0 0.0
        %v1469 = vand.u32 %v321, 4294901760
        %1470 = vmatmul.mubr.f32.gmra.mxu0 %v1469
        %v1471 = vpop.f32.mrf.mxu0
        %v1472 = vadd.f32 %v1229, %v1471
        %v1473 = vpop.f32.mrf.mxu0
        %v1474 = vadd.f32 %v1231, %v1473
        %1475 = vmatprep.mubr.f32.mxu0 0.0
        %v1476 = vand.u32 %v324, 4294901760
        %1477 = vmatmul.mubr.f32.gmra.mxu0 %v1476
        %v1478 = vpop.f32.mrf.mxu0
        %v1479 = vadd.f32 %v1238, %v1478
        %v1480 = vpop.f32.mrf.mxu0
        %v1481 = vadd.f32 %v1240, %v1480
        %1482 = vmatprep.mubr.f32.mxu0 0.0
        %v1483 = vand.u32 %v327, 4294901760
        %1484 = vmatmul.mubr.f32.gmra.mxu0 %v1483
        %v1485 = vpop.f32.mrf.mxu0
        %v1486 = vadd.f32 %v1247, %v1485
        %v1487 = vpop.f32.mrf.mxu0
        %v1488 = vadd.f32 %v1249, %v1487
        %1489 = vmatprep.mubr.f32.mxu0 0.0
        %v1490 = vand.u32 %v330, 4294901760
        %1491 = vmatmul.mubr.f32.gmra.mxu0 %v1490
        %v1492 = vpop.f32.mrf.mxu0
        %v1493 = vadd.f32 %v1256, %v1492
        %v1494 = vpop.f32.mrf.mxu0
        %v1495 = vadd.f32 %v1258, %v1494
        %1496 = vmatprep.mubr.f32.mxu0 0.0
        %v1497 = vand.u32 %v333, 4294901760
        %1498 = vmatmul.mubr.f32.gmra.mxu0 %v1497
        %v1499 = vpop.f32.mrf.mxu0
        %v1500 = vadd.f32 %v1265, %v1499
        %v1501 = vpop.f32.mrf.mxu0
        %v1502 = vadd.f32 %v1267, %v1501
        %1503 = vmatprep.mubr.f32.mxu0 0.0
        %v1504 = vand.u32 %v336, 4294901760
        %1505 = vmatmul.mubr.f32.gmra.mxu0 %v1504
        %v1506 = vpop.f32.mrf.mxu0
        %v1507 = vadd.f32 %v1274, %v1506
        %v1508 = vpop.f32.mrf.mxu0
        %v1509 = vadd.f32 %v1276, %v1508
        %1510 = vmatprep.mubr.f32.mxu0 0.0
        %v1511 = vand.u32 %v339, 4294901760
        %1512 = vmatmul.mubr.f32.gmra.mxu0 %v1511
        %v1513 = vpop.f32.mrf.mxu0
        %v1514 = vadd.f32 %v1283, %v1513
        %v1515 = vpop.f32.mrf.mxu0
        %v1516 = vadd.f32 %v1285, %v1515
        %1517 = vmatprep.mubr.f32.mxu0 0.0
        %v1518 = vand.u32 %v342, 4294901760
        %1519 = vmatmul.mubr.f32.gmra.mxu0 %v1518
        %v1520 = vpop.f32.mrf.mxu0
        %v1521 = vadd.f32 %v1292, %v1520
        %v1522 = vpop.f32.mrf.mxu0
        %v1523 = vadd.f32 %v1294, %v1522
        %1524 = vmatprep.mubr.f32.mxu0 0.0
        %v1525 = vand.u32 %v345, 4294901760
        %1526 = vmatmul.mubr.f32.gmra.mxu0 %v1525
        %v1527 = vpop.f32.mrf.mxu0
        %v1528 = vadd.f32 %v1301, %v1527
        %v1529 = vpop.f32.mrf.mxu0
        %v1530 = vadd.f32 %v1303, %v1529
        %1531 = vmatprep.mubr.f32.mxu0 0.0
        %v1532 = vand.u32 %v348, 4294901760
        %1533 = vmatmul.mubr.f32.gmra.mxu0 %v1532
        %v1534 = vpop.f32.mrf.mxu0
        %v1535 = vadd.f32 %v1310, %v1534
        %v1536 = vpop.f32.mrf.mxu0
        %v1537 = vadd.f32 %v1312, %v1536
        %1538 = vdwg.mxu0
        %1539 = vmatprep.subr.mxu0 0.0
        %1540 = vmatpush1.msra.mxu0 0.0
        %1541 = vmatprep.subr.mxu0 0.0
        %1542 = vmatpush1.msra.mxu0 0.0
        %1543 = vmatprep.subr.mxu0 0.0
        %1544 = vmatpush1.msra.mxu0 0.0
        %1545 = vmatprep.subr.mxu0 0.0
        %1546 = vmatpush1.msra.mxu0 0.0
        %1547 = vmatprep.subr.mxu0 0.0
        %1548 = vmatpush1.msra.mxu0 0.0
        %1549 = vmatprep.subr.mxu0 0.0
        %1550 = vmatpush1.msra.mxu0 0.0
        %1551 = vmatprep.subr.mxu0 0.0
        %1552 = vmatpush1.msra.mxu0 0.0
        %1553 = vmatprep.subr.mxu0 0.0
        %1554 = vmatpush1.msra.mxu0 0.0
        %v1555 = vand.u32 %v300, 4294901760
        %1556 = vmatprep.subr.mxu0 %v1555
        %v1557 = vand.u32 %v299, 4294901760
        %1558 = vmatpush1.msra.mxu0 %v1557
        %v1559 = vand.u32 %v298, 4294901760
        %1560 = vmatprep.subr.mxu0 %v1559
        %v1561 = vand.u32 %v297, 4294901760
        %1562 = vmatpush1.msra.mxu0 %v1561
        %v1563 = vand.u32 %v296, 4294901760
        %1564 = vmatprep.subr.mxu0 %v1563
        %v1565 = vand.u32 %v295, 4294901760
        %1566 = vmatpush1.msra.mxu0 %v1565
        %v1567 = vand.u32 %v294, 4294901760
        %1568 = vmatprep.subr.mxu0 %v1567
        %v1569 = vand.u32 %v293, 4294901760
        %1570 = vmatpush1.msra.mxu0 %v1569
        %v1571 = vand.u32 %v292, 4294901760
        %1572 = vmatprep.subr.mxu0 %v1571
        %v1573 = vand.u32 %v291, 4294901760
        %1574 = vmatpush1.msra.mxu0 %v1573
        %v1575 = vand.u32 %v290, 4294901760
        %1576 = vmatprep.subr.mxu0 %v1575
        %v1577 = vand.u32 %v289, 4294901760
        %1578 = vmatpush1.msra.mxu0 %v1577
        %v1579 = vand.u32 %v288, 4294901760
        %1580 = vmatprep.subr.mxu0 %v1579
        %v1581 = vand.u32 %v287, 4294901760
        %1582 = vmatpush1.msra.mxu0 %v1581
        %v1583 = vand.u32 %v286, 4294901760
        %1584 = vmatprep.subr.mxu0 %v1583
        %v1585 = vand.u32 %v285, 4294901760
        %1586 = vmatpush1.msra.mxu0 %v1585
        %1587 = vmatprep.subr.mxu0 0.0
        %1588 = vmatpush2.msra.mxu0 0.0
        %1589 = vmatprep.subr.mxu0 0.0
        %1590 = vmatpush2.msra.mxu0 0.0
        %1591 = vmatprep.subr.mxu0 0.0
        %1592 = vmatpush2.msra.mxu0 0.0
        %1593 = vmatprep.subr.mxu0 0.0
        %1594 = vmatpush2.msra.mxu0 0.0
        %1595 = vmatprep.subr.mxu0 0.0
        %1596 = vmatpush2.msra.mxu0 0.0
        %1597 = vmatprep.subr.mxu0 0.0
        %1598 = vmatpush2.msra.mxu0 0.0
        %1599 = vmatprep.subr.mxu0 0.0
        %1600 = vmatpush2.msra.mxu0 0.0
        %1601 = vmatprep.subr.mxu0 0.0
        %1602 = vmatpush2.msra.mxu0 0.0
        %1603 = vmatprep.subr.mxu0 0.0
        %1604 = vmatpush2.msra.mxu0 0.0
        %1605 = vmatprep.subr.mxu0 0.0
        %1606 = vmatpush2.msra.mxu0 0.0
        %1607 = vmatprep.subr.mxu0 0.0
        %1608 = vmatpush2.msra.mxu0 0.0
        %1609 = vmatprep.subr.mxu0 0.0
        %1610 = vmatpush2.msra.mxu0 0.0
        %1611 = vmatprep.subr.mxu0 0.0
        %1612 = vmatpush2.msra.mxu0 0.0
        %1613 = vmatprep.subr.mxu0 0.0
        %1614 = vmatpush2.msra.mxu0 0.0
        %1615 = vmatprep.subr.mxu0 0.0
        %1616 = vmatpush2.msra.mxu0 0.0
        %1617 = vmatprep.subr.mxu0 0.0
        %1618 = vmatpush2.msra.mxu0 0.0
        %1619 = vmatprep.mubr.f32.mxu0 0.0
        %v1620 = vand.u32 %v303, 4294901760
        %1621 = vmatmul.mubr.f32.gmra.mxu0 %v1620
        %v1622 = vpop.f32.mrf.mxu0
        %v1623 = vadd.f32 %v1430, %v1622
        %v1624 = vpop.f32.mrf.mxu0
        %v1625 = vadd.f32 %v1432, %v1624
        %1626 = vmatprep.mubr.f32.mxu0 0.0
        %v1627 = vand.u32 %v306, 4294901760
        %1628 = vmatmul.mubr.f32.gmra.mxu0 %v1627
        %v1629 = vpop.f32.mrf.mxu0
        %v1630 = vadd.f32 %v1437, %v1629
        %v1631 = vpop.f32.mrf.mxu0
        %v1632 = vadd.f32 %v1439, %v1631
        %1633 = vmatprep.mubr.f32.mxu0 0.0
        %v1634 = vand.u32 %v309, 4294901760
        %1635 = vmatmul.mubr.f32.gmra.mxu0 %v1634
        %v1636 = vpop.f32.mrf.mxu0
        %v1637 = vadd.f32 %v1444, %v1636
        %v1638 = vpop.f32.mrf.mxu0
        %v1639 = vadd.f32 %v1446, %v1638
        %1640 = vmatprep.mubr.f32.mxu0 0.0
        %v1641 = vand.u32 %v312, 4294901760
        %1642 = vmatmul.mubr.f32.gmra.mxu0 %v1641
        %v1643 = vpop.f32.mrf.mxu0
        %v1644 = vadd.f32 %v1451, %v1643
        %v1645 = vpop.f32.mrf.mxu0
        %v1646 = vadd.f32 %v1453, %v1645
        %1647 = vmatprep.mubr.f32.mxu0 0.0
        %v1648 = vand.u32 %v315, 4294901760
        %1649 = vmatmul.mubr.f32.gmra.mxu0 %v1648
        %v1650 = vpop.f32.mrf.mxu0
        %v1651 = vadd.f32 %v1458, %v1650
        %v1652 = vpop.f32.mrf.mxu0
        %v1653 = vadd.f32 %v1460, %v1652
        %1654 = vmatprep.mubr.f32.mxu0 0.0
        %v1655 = vand.u32 %v318, 4294901760
        %1656 = vmatmul.mubr.f32.gmra.mxu0 %v1655
        %v1657 = vpop.f32.mrf.mxu0
        %v1658 = vadd.f32 %v1465, %v1657
        %v1659 = vpop.f32.mrf.mxu0
        %v1660 = vadd.f32 %v1467, %v1659
        %1661 = vmatprep.mubr.f32.mxu0 0.0
        %v1662 = vand.u32 %v321, 4294901760
        %1663 = vmatmul.mubr.f32.gmra.mxu0 %v1662
        %v1664 = vpop.f32.mrf.mxu0
        %v1665 = vadd.f32 %v1472, %v1664
        %v1666 = vpop.f32.mrf.mxu0
        %v1667 = vadd.f32 %v1474, %v1666
        %1668 = vmatprep.mubr.f32.mxu0 0.0
        %v1669 = vand.u32 %v324, 4294901760
        %1670 = vmatmul.mubr.f32.gmra.mxu0 %v1669
        %v1671 = vpop.f32.mrf.mxu0
        %v1672 = vadd.f32 %v1479, %v1671
        %v1673 = vpop.f32.mrf.mxu0
        %v1674 = vadd.f32 %v1481, %v1673
        %1675 = vmatprep.mubr.f32.mxu0 0.0
        %v1676 = vand.u32 %v327, 4294901760
        %1677 = vmatmul.mubr.f32.gmra.mxu0 %v1676
        %v1678 = vpop.f32.mrf.mxu0
        %v1679 = vadd.f32 %v1486, %v1678
        %v1680 = vpop.f32.mrf.mxu0
        %v1681 = vadd.f32 %v1488, %v1680
        %1682 = vmatprep.mubr.f32.mxu0 0.0
        %v1683 = vand.u32 %v330, 4294901760
        %1684 = vmatmul.mubr.f32.gmra.mxu0 %v1683
        %v1685 = vpop.f32.mrf.mxu0
        %v1686 = vadd.f32 %v1493, %v1685
        %v1687 = vpop.f32.mrf.mxu0
        %v1688 = vadd.f32 %v1495, %v1687
        %1689 = vmatprep.mubr.f32.mxu0 0.0
        %v1690 = vand.u32 %v333, 4294901760
        %1691 = vmatmul.mubr.f32.gmra.mxu0 %v1690
        %v1692 = vpop.f32.mrf.mxu0
        %v1693 = vadd.f32 %v1500, %v1692
        %v1694 = vpop.f32.mrf.mxu0
        %v1695 = vadd.f32 %v1502, %v1694
        %1696 = vmatprep.mubr.f32.mxu0 0.0
        %v1697 = vand.u32 %v336, 4294901760
        %1698 = vmatmul.mubr.f32.gmra.mxu0 %v1697
        %v1699 = vpop.f32.mrf.mxu0
        %v1700 = vadd.f32 %v1507, %v1699
        %v1701 = vpop.f32.mrf.mxu0
        %v1702 = vadd.f32 %v1509, %v1701
        %1703 = vmatprep.mubr.f32.mxu0 0.0
        %v1704 = vand.u32 %v339, 4294901760
        %1705 = vmatmul.mubr.f32.gmra.mxu0 %v1704
        %v1706 = vpop.f32.mrf.mxu0
        %v1707 = vadd.f32 %v1514, %v1706
        %v1708 = vpop.f32.mrf.mxu0
        %v1709 = vadd.f32 %v1516, %v1708
        %1710 = vmatprep.mubr.f32.mxu0 0.0
        %v1711 = vand.u32 %v342, 4294901760
        %1712 = vmatmul.mubr.f32.gmra.mxu0 %v1711
        %v1713 = vpop.f32.mrf.mxu0
        %v1714 = vadd.f32 %v1521, %v1713
        %v1715 = vpop.f32.mrf.mxu0
        %v1716 = vadd.f32 %v1523, %v1715
        %1717 = vmatprep.mubr.f32.mxu0 0.0
        %v1718 = vand.u32 %v345, 4294901760
        %1719 = vmatmul.mubr.f32.gmra.mxu0 %v1718
        %v1720 = vpop.f32.mrf.mxu0
        %v1721 = vadd.f32 %v1528, %v1720
        %v1722 = vpop.f32.mrf.mxu0
        %v1723 = vadd.f32 %v1530, %v1722
        %1724 = vmatprep.mubr.f32.mxu0 0.0
        %v1725 = vand.u32 %v348, 4294901760
        %1726 = vmatmul.mubr.f32.gmra.mxu0 %v1725
        %v1727 = vpop.f32.mrf.mxu0
        %v1728 = vadd.f32 %v1535, %v1727
        %v1729 = vpop.f32.mrf.mxu0
        %v1730 = vadd.f32 %v1537, %v1729
        %1731 = vdwg.mxu0
        %v1732 = vld [vmem:[%s251] sm:$0xff]
        %v1733 = vld [vmem:[%s251 + $0x8] sm:$0xff]
        %v1734 = vld [vmem:[%s251 + $0x10] sm:$0xff]
        %v1735 = vld [vmem:[%s251 + $0x18] sm:$0xff]
        %v1736 = vld [vmem:[%s251 + $0x20] sm:$0xff]
        %v1737 = vld [vmem:[%s251 + $0x28] sm:$0xff]
        %v1738 = vld [vmem:[%s251 + $0x30] sm:$0xff]
        %v1739 = vld [vmem:[%s251 + $0x38] sm:$0xff]
        %v1740 = vld [vmem:[%s251 + $0x40] sm:$0xff]
        %v1741 = vld [vmem:[%s251 + $0x48] sm:$0xff]
        %v1742 = vld [vmem:[%s251 + $0x50] sm:$0xff]
        %v1743 = vld [vmem:[%s251 + $0x58] sm:$0xff]
        %v1744 = vld [vmem:[%s251 + $0x60] sm:$0xff]
        %v1745 = vld [vmem:[%s251 + $0x68] sm:$0xff]
        %v1746 = vld [vmem:[%s251 + $0x70] sm:$0xff]
        %v1747 = vld [vmem:[%s251 + $0x78] sm:$0xff]
        %v1748 = vld [vmem:[%s3] sm:$0x3]
        %1750 = vset.pattern.permute.xlu0 0
        %1751 = vperm.xlu0 %1750, %v1732
        %v1752 = vpop.permute.xlu0 %1751
        %1755 = vset.pattern.permute.xlu0 0
        %1756 = vperm.xlu0 %1755, %v1733
        %v1757 = vpop.permute.xlu0 %1756
        %1760 = vset.pattern.permute.xlu0 0
        %1761 = vperm.xlu0 %1760, %v1734
        %v1762 = vpop.permute.xlu0 %1761
        %1765 = vset.pattern.permute.xlu0 0
        %1766 = vperm.xlu0 %1765, %v1735
        %v1767 = vpop.permute.xlu0 %1766
        %1770 = vset.pattern.permute.xlu0 0
        %1771 = vperm.xlu0 %1770, %v1736
        %v1772 = vpop.permute.xlu0 %1771
        %1775 = vset.pattern.permute.xlu0 0
        %1776 = vperm.xlu0 %1775, %v1737
        %v1777 = vpop.permute.xlu0 %1776
        %1780 = vset.pattern.permute.xlu0 0
        %1781 = vperm.xlu0 %1780, %v1738
        %v1782 = vpop.permute.xlu0 %1781
        %1785 = vset.pattern.permute.xlu0 0
        %1786 = vperm.xlu0 %1785, %v1739
        %v1787 = vpop.permute.xlu0 %1786
        %1790 = vset.pattern.permute.xlu0 0
        %1791 = vperm.xlu0 %1790, %v1740
        %v1792 = vpop.permute.xlu0 %1791
        %1795 = vset.pattern.permute.xlu0 0
        %1796 = vperm.xlu0 %1795, %v1741
        %v1797 = vpop.permute.xlu0 %1796
        %1800 = vset.pattern.permute.xlu0 0
        %1801 = vperm.xlu0 %1800, %v1742
        %v1802 = vpop.permute.xlu0 %1801
        %1805 = vset.pattern.permute.xlu0 0
        %1806 = vperm.xlu0 %1805, %v1743
        %v1807 = vpop.permute.xlu0 %1806
        %1810 = vset.pattern.permute.xlu0 0
        %1811 = vperm.xlu0 %1810, %v1744
        %v1812 = vpop.permute.xlu0 %1811
        %1815 = vset.pattern.permute.xlu0 0
        %1816 = vperm.xlu0 %1815, %v1745
        %v1817 = vpop.permute.xlu0 %1816
        %1820 = vset.pattern.permute.xlu0 0
        %1821 = vperm.xlu0 %1820, %v1746
        %v1822 = vpop.permute.xlu0 %1821
        %1825 = vset.pattern.permute.xlu0 0
        %1826 = vperm.xlu0 %1825, %v1747
        %v1827 = vpop.permute.xlu0 %1826
        %v1830 = vlaneseq
        %v1831 = vshrl.u32 %v1830, 7
        %v1832 = vsub.s32 0, %v1831
        %v1833 = vrot.slane %v1748, %v1832
        %v1834 = vlaneseq
        %v1835 = vshrl.u32 %v1834, 7
        %v1836 = vsub.s32 1, %v1835
        %v1837 = vrot.slane %v1748, %v1836
        %v1840 = vadd.f32 %v1752, %v1833
        %v1841 = vadd.f32 %v1752, %v1837
        %v1842 = vadd.f32 %v1757, %v1833
        %v1843 = vadd.f32 %v1757, %v1837
        %v1844 = vadd.f32 %v1762, %v1833
        %v1845 = vadd.f32 %v1762, %v1837
        %v1846 = vadd.f32 %v1767, %v1833
        %v1847 = vadd.f32 %v1767, %v1837
        %v1848 = vadd.f32 %v1772, %v1833
        %v1849 = vadd.f32 %v1772, %v1837
        %v1850 = vadd.f32 %v1777, %v1833
        %v1851 = vadd.f32 %v1777, %v1837
        %v1852 = vadd.f32 %v1782, %v1833
        %v1853 = vadd.f32 %v1782, %v1837
        %v1854 = vadd.f32 %v1787, %v1833
        %v1855 = vadd.f32 %v1787, %v1837
        %v1856 = vadd.f32 %v1792, %v1833
        %v1857 = vadd.f32 %v1792, %v1837
        %v1858 = vadd.f32 %v1797, %v1833
        %v1859 = vadd.f32 %v1797, %v1837
        %v1860 = vadd.f32 %v1802, %v1833
        %v1861 = vadd.f32 %v1802, %v1837
        %v1862 = vadd.f32 %v1807, %v1833
        %v1863 = vadd.f32 %v1807, %v1837
        %v1864 = vadd.f32 %v1812, %v1833
        %v1865 = vadd.f32 %v1812, %v1837
        %v1866 = vadd.f32 %v1817, %v1833
        %v1867 = vadd.f32 %v1817, %v1837
        %v1868 = vadd.f32 %v1822, %v1833
        %v1869 = vadd.f32 %v1822, %v1837
        %v1870 = vadd.f32 %v1827, %v1833
        %v1871 = vadd.f32 %v1827, %v1837
        %v1872 = vmul.f32 %v1623, 2.0
        %v1873 = vmul.f32 %v1625, 2.0
        %v1874 = vmul.f32 %v1630, 2.0
        %v1875 = vmul.f32 %v1632, 2.0
        %v1876 = vmul.f32 %v1637, 2.0
        %v1877 = vmul.f32 %v1639, 2.0
        %v1878 = vmul.f32 %v1644, 2.0
        %v1879 = vmul.f32 %v1646, 2.0
        %v1880 = vmul.f32 %v1651, 2.0
        %v1881 = vmul.f32 %v1653, 2.0
        %v1882 = vmul.f32 %v1658, 2.0
        %v1883 = vmul.f32 %v1660, 2.0
        %v1884 = vmul.f32 %v1665, 2.0
        %v1885 = vmul.f32 %v1667, 2.0
        %v1886 = vmul.f32 %v1672, 2.0
        %v1887 = vmul.f32 %v1674, 2.0
        %v1888 = vmul.f32 %v1679, 2.0
        %v1889 = vmul.f32 %v1681, 2.0
        %v1890 = vmul.f32 %v1686, 2.0
        %v1891 = vmul.f32 %v1688, 2.0
        %v1892 = vmul.f32 %v1693, 2.0
        %v1893 = vmul.f32 %v1695, 2.0
        %v1894 = vmul.f32 %v1700, 2.0
        %v1895 = vmul.f32 %v1702, 2.0
        %v1896 = vmul.f32 %v1707, 2.0
        %v1897 = vmul.f32 %v1709, 2.0
        %v1898 = vmul.f32 %v1714, 2.0
        %v1899 = vmul.f32 %v1716, 2.0
        %v1900 = vmul.f32 %v1721, 2.0
        %v1901 = vmul.f32 %v1723, 2.0
        %v1902 = vmul.f32 %v1728, 2.0
        %v1903 = vmul.f32 %v1730, 2.0
        %v1904 = vsub.f32 %v1840, %v1872
        %v1905 = vsub.f32 %v1841, %v1873
        %v1906 = vsub.f32 %v1842, %v1874
        %v1907 = vsub.f32 %v1843, %v1875
        %v1908 = vsub.f32 %v1844, %v1876
        %v1909 = vsub.f32 %v1845, %v1877
        %v1910 = vsub.f32 %v1846, %v1878
        %v1911 = vsub.f32 %v1847, %v1879
        %v1912 = vsub.f32 %v1848, %v1880
        %v1913 = vsub.f32 %v1849, %v1881
        %v1914 = vsub.f32 %v1850, %v1882
        %v1915 = vsub.f32 %v1851, %v1883
        %v1916 = vsub.f32 %v1852, %v1884
        %v1917 = vsub.f32 %v1853, %v1885
        %v1918 = vsub.f32 %v1854, %v1886
        %v1919 = vsub.f32 %v1855, %v1887
        %v1920 = vsub.f32 %v1856, %v1888
        %v1921 = vsub.f32 %v1857, %v1889
        %v1922 = vsub.f32 %v1858, %v1890
        %v1923 = vsub.f32 %v1859, %v1891
        %v1924 = vsub.f32 %v1860, %v1892
        %v1925 = vsub.f32 %v1861, %v1893
        %v1926 = vsub.f32 %v1862, %v1894
        %v1927 = vsub.f32 %v1863, %v1895
        %v1928 = vsub.f32 %v1864, %v1896
        %v1929 = vsub.f32 %v1865, %v1897
        %v1930 = vsub.f32 %v1866, %v1898
        %v1931 = vsub.f32 %v1867, %v1899
        %v1932 = vsub.f32 %v1868, %v1900
        %v1933 = vsub.f32 %v1869, %v1901
        %v1934 = vsub.f32 %v1870, %v1902
        %v1935 = vsub.f32 %v1871, %v1903
        %v1936 = vmax.f32 %v1904, 0.0
        %v1937 = vmax.f32 %v1905, 0.0
        %v1938 = vmax.f32 %v1906, 0.0
        %v1939 = vmax.f32 %v1907, 0.0
        %v1940 = vmax.f32 %v1908, 0.0
        %v1941 = vmax.f32 %v1909, 0.0
        %v1942 = vmax.f32 %v1910, 0.0
        %v1943 = vmax.f32 %v1911, 0.0
        %v1944 = vmax.f32 %v1912, 0.0
        %v1945 = vmax.f32 %v1913, 0.0
        %v1946 = vmax.f32 %v1914, 0.0
        %v1947 = vmax.f32 %v1915, 0.0
        %v1948 = vmax.f32 %v1916, 0.0
        %v1949 = vmax.f32 %v1917, 0.0
        %v1950 = vmax.f32 %v1918, 0.0
        %v1951 = vmax.f32 %v1919, 0.0
        %v1952 = vmax.f32 %v1920, 0.0
        %v1953 = vmax.f32 %v1921, 0.0
        %v1954 = vmax.f32 %v1922, 0.0
        %v1955 = vmax.f32 %v1923, 0.0
        %v1956 = vmax.f32 %v1924, 0.0
        %v1957 = vmax.f32 %v1925, 0.0
        %v1958 = vmax.f32 %v1926, 0.0
        %v1959 = vmax.f32 %v1927, 0.0
        %v1960 = vmax.f32 %v1928, 0.0
        %v1961 = vmax.f32 %v1929, 0.0
        %v1962 = vmax.f32 %v1930, 0.0
        %v1963 = vmax.f32 %v1931, 0.0
        %v1964 = vmax.f32 %v1932, 0.0
        %v1965 = vmax.f32 %v1933, 0.0
        %v1966 = vmax.f32 %v1934, 0.0
        %v1967 = vmax.f32 %v1935, 0.0
        %v1968 = vrsqrt.pop %v1936
        %v1969 = vmul.f32 %v1936, %v1968
        %vm1970 = vcmp.eq.f32.partialorder %v1936, inf
        %v1971 = vsel %vm1970, %v1936, %v1969
        %vm1972 = vcmp.eq.f32.partialorder %v1936, 0.0
        %v1973 = vand.u32 %v1936, 2147483648
        %v1974 = vsel %vm1972, %v1973, %v1971
        %v1975 = vrsqrt.pop %v1937
        %v1976 = vmul.f32 %v1937, %v1975
        %vm1977 = vcmp.eq.f32.partialorder %v1937, inf
        %v1978 = vsel %vm1977, %v1937, %v1976
        %vm1979 = vcmp.eq.f32.partialorder %v1937, 0.0
        %v1980 = vand.u32 %v1937, 2147483648
        %v1981 = vsel %vm1979, %v1980, %v1978
        %v1982 = vrsqrt.pop %v1938
        %v1983 = vmul.f32 %v1938, %v1982
        %vm1984 = vcmp.eq.f32.partialorder %v1938, inf
        %v1985 = vsel %vm1984, %v1938, %v1983
        %vm1986 = vcmp.eq.f32.partialorder %v1938, 0.0
        %v1987 = vand.u32 %v1938, 2147483648
        %v1988 = vsel %vm1986, %v1987, %v1985
        %v1989 = vrsqrt.pop %v1939
        %v1990 = vmul.f32 %v1939, %v1989
        %vm1991 = vcmp.eq.f32.partialorder %v1939, inf
        %v1992 = vsel %vm1991, %v1939, %v1990
        %vm1993 = vcmp.eq.f32.partialorder %v1939, 0.0
        %v1994 = vand.u32 %v1939, 2147483648
        %v1995 = vsel %vm1993, %v1994, %v1992
        %v1996 = vrsqrt.pop %v1940
        %v1997 = vmul.f32 %v1940, %v1996
        %vm1998 = vcmp.eq.f32.partialorder %v1940, inf
        %v1999 = vsel %vm1998, %v1940, %v1997
        %vm2000 = vcmp.eq.f32.partialorder %v1940, 0.0
        %v2001 = vand.u32 %v1940, 2147483648
        %v2002 = vsel %vm2000, %v2001, %v1999
        %v2003 = vrsqrt.pop %v1941
        %v2004 = vmul.f32 %v1941, %v2003
        %vm2005 = vcmp.eq.f32.partialorder %v1941, inf
        %v2006 = vsel %vm2005, %v1941, %v2004
        %vm2007 = vcmp.eq.f32.partialorder %v1941, 0.0
        %v2008 = vand.u32 %v1941, 2147483648
        %v2009 = vsel %vm2007, %v2008, %v2006
        %v2010 = vrsqrt.pop %v1942
        %v2011 = vmul.f32 %v1942, %v2010
        %vm2012 = vcmp.eq.f32.partialorder %v1942, inf
        %v2013 = vsel %vm2012, %v1942, %v2011
        %vm2014 = vcmp.eq.f32.partialorder %v1942, 0.0
        %v2015 = vand.u32 %v1942, 2147483648
        %v2016 = vsel %vm2014, %v2015, %v2013
        %v2017 = vrsqrt.pop %v1943
        %v2018 = vmul.f32 %v1943, %v2017
        %vm2019 = vcmp.eq.f32.partialorder %v1943, inf
        %v2020 = vsel %vm2019, %v1943, %v2018
        %vm2021 = vcmp.eq.f32.partialorder %v1943, 0.0
        %v2022 = vand.u32 %v1943, 2147483648
        %v2023 = vsel %vm2021, %v2022, %v2020
        %v2024 = vrsqrt.pop %v1944
        %v2025 = vmul.f32 %v1944, %v2024
        %vm2026 = vcmp.eq.f32.partialorder %v1944, inf
        %v2027 = vsel %vm2026, %v1944, %v2025
        %vm2028 = vcmp.eq.f32.partialorder %v1944, 0.0
        %v2029 = vand.u32 %v1944, 2147483648
        %v2030 = vsel %vm2028, %v2029, %v2027
        %v2031 = vrsqrt.pop %v1945
        %v2032 = vmul.f32 %v1945, %v2031
        %vm2033 = vcmp.eq.f32.partialorder %v1945, inf
        %v2034 = vsel %vm2033, %v1945, %v2032
        %vm2035 = vcmp.eq.f32.partialorder %v1945, 0.0
        %v2036 = vand.u32 %v1945, 2147483648
        %v2037 = vsel %vm2035, %v2036, %v2034
        %v2038 = vrsqrt.pop %v1946
        %v2039 = vmul.f32 %v1946, %v2038
        %vm2040 = vcmp.eq.f32.partialorder %v1946, inf
        %v2041 = vsel %vm2040, %v1946, %v2039
        %vm2042 = vcmp.eq.f32.partialorder %v1946, 0.0
        %v2043 = vand.u32 %v1946, 2147483648
        %v2044 = vsel %vm2042, %v2043, %v2041
        %v2045 = vrsqrt.pop %v1947
        %v2046 = vmul.f32 %v1947, %v2045
        %vm2047 = vcmp.eq.f32.partialorder %v1947, inf
        %v2048 = vsel %vm2047, %v1947, %v2046
        %vm2049 = vcmp.eq.f32.partialorder %v1947, 0.0
        %v2050 = vand.u32 %v1947, 2147483648
        %v2051 = vsel %vm2049, %v2050, %v2048
        %v2052 = vrsqrt.pop %v1948
        %v2053 = vmul.f32 %v1948, %v2052
        %vm2054 = vcmp.eq.f32.partialorder %v1948, inf
        %v2055 = vsel %vm2054, %v1948, %v2053
        %vm2056 = vcmp.eq.f32.partialorder %v1948, 0.0
        %v2057 = vand.u32 %v1948, 2147483648
        %v2058 = vsel %vm2056, %v2057, %v2055
        %v2059 = vrsqrt.pop %v1949
        %v2060 = vmul.f32 %v1949, %v2059
        %vm2061 = vcmp.eq.f32.partialorder %v1949, inf
        %v2062 = vsel %vm2061, %v1949, %v2060
        %vm2063 = vcmp.eq.f32.partialorder %v1949, 0.0
        %v2064 = vand.u32 %v1949, 2147483648
        %v2065 = vsel %vm2063, %v2064, %v2062
        %v2066 = vrsqrt.pop %v1950
        %v2067 = vmul.f32 %v1950, %v2066
        %vm2068 = vcmp.eq.f32.partialorder %v1950, inf
        %v2069 = vsel %vm2068, %v1950, %v2067
        %vm2070 = vcmp.eq.f32.partialorder %v1950, 0.0
        %v2071 = vand.u32 %v1950, 2147483648
        %v2072 = vsel %vm2070, %v2071, %v2069
        %v2073 = vrsqrt.pop %v1951
        %v2074 = vmul.f32 %v1951, %v2073
        %vm2075 = vcmp.eq.f32.partialorder %v1951, inf
        %v2076 = vsel %vm2075, %v1951, %v2074
        %vm2077 = vcmp.eq.f32.partialorder %v1951, 0.0
        %v2078 = vand.u32 %v1951, 2147483648
        %v2079 = vsel %vm2077, %v2078, %v2076
        %v2080 = vrsqrt.pop %v1952
        %v2081 = vmul.f32 %v1952, %v2080
        %vm2082 = vcmp.eq.f32.partialorder %v1952, inf
        %v2083 = vsel %vm2082, %v1952, %v2081
        %vm2084 = vcmp.eq.f32.partialorder %v1952, 0.0
        %v2085 = vand.u32 %v1952, 2147483648
        %v2086 = vsel %vm2084, %v2085, %v2083
        %v2087 = vrsqrt.pop %v1953
        %v2088 = vmul.f32 %v1953, %v2087
        %vm2089 = vcmp.eq.f32.partialorder %v1953, inf
        %v2090 = vsel %vm2089, %v1953, %v2088
        %vm2091 = vcmp.eq.f32.partialorder %v1953, 0.0
        %v2092 = vand.u32 %v1953, 2147483648
        %v2093 = vsel %vm2091, %v2092, %v2090
        %v2094 = vrsqrt.pop %v1954
        %v2095 = vmul.f32 %v1954, %v2094
        %vm2096 = vcmp.eq.f32.partialorder %v1954, inf
        %v2097 = vsel %vm2096, %v1954, %v2095
        %vm2098 = vcmp.eq.f32.partialorder %v1954, 0.0
        %v2099 = vand.u32 %v1954, 2147483648
        %v2100 = vsel %vm2098, %v2099, %v2097
        %v2101 = vrsqrt.pop %v1955
        %v2102 = vmul.f32 %v1955, %v2101
        %vm2103 = vcmp.eq.f32.partialorder %v1955, inf
        %v2104 = vsel %vm2103, %v1955, %v2102
        %vm2105 = vcmp.eq.f32.partialorder %v1955, 0.0
        %v2106 = vand.u32 %v1955, 2147483648
        %v2107 = vsel %vm2105, %v2106, %v2104
        %v2108 = vrsqrt.pop %v1956
        %v2109 = vmul.f32 %v1956, %v2108
        %vm2110 = vcmp.eq.f32.partialorder %v1956, inf
        %v2111 = vsel %vm2110, %v1956, %v2109
        %vm2112 = vcmp.eq.f32.partialorder %v1956, 0.0
        %v2113 = vand.u32 %v1956, 2147483648
        %v2114 = vsel %vm2112, %v2113, %v2111
        %v2115 = vrsqrt.pop %v1957
        %v2116 = vmul.f32 %v1957, %v2115
        %vm2117 = vcmp.eq.f32.partialorder %v1957, inf
        %v2118 = vsel %vm2117, %v1957, %v2116
        %vm2119 = vcmp.eq.f32.partialorder %v1957, 0.0
        %v2120 = vand.u32 %v1957, 2147483648
        %v2121 = vsel %vm2119, %v2120, %v2118
        %v2122 = vrsqrt.pop %v1958
        %v2123 = vmul.f32 %v1958, %v2122
        %vm2124 = vcmp.eq.f32.partialorder %v1958, inf
        %v2125 = vsel %vm2124, %v1958, %v2123
        %vm2126 = vcmp.eq.f32.partialorder %v1958, 0.0
        %v2127 = vand.u32 %v1958, 2147483648
        %v2128 = vsel %vm2126, %v2127, %v2125
        %v2129 = vrsqrt.pop %v1959
        %v2130 = vmul.f32 %v1959, %v2129
        %vm2131 = vcmp.eq.f32.partialorder %v1959, inf
        %v2132 = vsel %vm2131, %v1959, %v2130
        %vm2133 = vcmp.eq.f32.partialorder %v1959, 0.0
        %v2134 = vand.u32 %v1959, 2147483648
        %v2135 = vsel %vm2133, %v2134, %v2132
        %v2136 = vrsqrt.pop %v1960
        %v2137 = vmul.f32 %v1960, %v2136
        %vm2138 = vcmp.eq.f32.partialorder %v1960, inf
        %v2139 = vsel %vm2138, %v1960, %v2137
        %vm2140 = vcmp.eq.f32.partialorder %v1960, 0.0
        %v2141 = vand.u32 %v1960, 2147483648
        %v2142 = vsel %vm2140, %v2141, %v2139
        %v2143 = vrsqrt.pop %v1961
        %v2144 = vmul.f32 %v1961, %v2143
        %vm2145 = vcmp.eq.f32.partialorder %v1961, inf
        %v2146 = vsel %vm2145, %v1961, %v2144
        %vm2147 = vcmp.eq.f32.partialorder %v1961, 0.0
        %v2148 = vand.u32 %v1961, 2147483648
        %v2149 = vsel %vm2147, %v2148, %v2146
        %v2150 = vrsqrt.pop %v1962
        %v2151 = vmul.f32 %v1962, %v2150
        %vm2152 = vcmp.eq.f32.partialorder %v1962, inf
        %v2153 = vsel %vm2152, %v1962, %v2151
        %vm2154 = vcmp.eq.f32.partialorder %v1962, 0.0
        %v2155 = vand.u32 %v1962, 2147483648
        %v2156 = vsel %vm2154, %v2155, %v2153
        %v2157 = vrsqrt.pop %v1963
        %v2158 = vmul.f32 %v1963, %v2157
        %vm2159 = vcmp.eq.f32.partialorder %v1963, inf
        %v2160 = vsel %vm2159, %v1963, %v2158
        %vm2161 = vcmp.eq.f32.partialorder %v1963, 0.0
        %v2162 = vand.u32 %v1963, 2147483648
        %v2163 = vsel %vm2161, %v2162, %v2160
        %v2164 = vrsqrt.pop %v1964
        %v2165 = vmul.f32 %v1964, %v2164
        %vm2166 = vcmp.eq.f32.partialorder %v1964, inf
        %v2167 = vsel %vm2166, %v1964, %v2165
        %vm2168 = vcmp.eq.f32.partialorder %v1964, 0.0
        %v2169 = vand.u32 %v1964, 2147483648
        %v2170 = vsel %vm2168, %v2169, %v2167
        %v2171 = vrsqrt.pop %v1965
        %v2172 = vmul.f32 %v1965, %v2171
        %vm2173 = vcmp.eq.f32.partialorder %v1965, inf
        %v2174 = vsel %vm2173, %v1965, %v2172
        %vm2175 = vcmp.eq.f32.partialorder %v1965, 0.0
        %v2176 = vand.u32 %v1965, 2147483648
        %v2177 = vsel %vm2175, %v2176, %v2174
        %v2178 = vrsqrt.pop %v1966
        %v2179 = vmul.f32 %v1966, %v2178
        %vm2180 = vcmp.eq.f32.partialorder %v1966, inf
        %v2181 = vsel %vm2180, %v1966, %v2179
        %vm2182 = vcmp.eq.f32.partialorder %v1966, 0.0
        %v2183 = vand.u32 %v1966, 2147483648
        %v2184 = vsel %vm2182, %v2183, %v2181
        %v2185 = vrsqrt.pop %v1967
        %v2186 = vmul.f32 %v1967, %v2185
        %vm2187 = vcmp.eq.f32.partialorder %v1967, inf
        %v2188 = vsel %vm2187, %v1967, %v2186
        %vm2189 = vcmp.eq.f32.partialorder %v1967, 0.0
        %v2190 = vand.u32 %v1967, 2147483648
        %v2191 = vsel %vm2189, %v2190, %v2188
        %v2192 = vlaneseq
        %v2193 = vshrl.u32 %v2192, 7
        %v2194 = vadd.s32 %v2193, 8
        %v2195 = vadd.s32 %v2193, 16
        %v2196 = vadd.s32 %v2193, 24
        %v2197 = vadd.s32 %v2193, 32
        %v2198 = vadd.s32 %v2193, 40
        %v2199 = vadd.s32 %v2193, 48
        %v2200 = vadd.s32 %v2193, 56
        %v2201 = vadd.s32 %v2193, 64
        %v2202 = vadd.s32 %v2193, 72
        %v2203 = vadd.s32 %v2193, 80
        %v2204 = vadd.s32 %v2193, 88
        %v2205 = vadd.s32 %v2193, 96
        %v2206 = vadd.s32 %v2193, 104
        %v2207 = vadd.s32 %v2193, 112
        %v2208 = vadd.s32 %v2193, 120
        %s2209 = smul.u32 %s17, 128
        %v2210 = vstv %s2209
        %v2211 = vadd.s32 %v2193, %v2210
        %v2212 = vadd.s32 %v2194, %v2210
        %v2213 = vadd.s32 %v2195, %v2210
        %v2214 = vadd.s32 %v2196, %v2210
        %v2215 = vadd.s32 %v2197, %v2210
        %v2216 = vadd.s32 %v2198, %v2210
        %v2217 = vadd.s32 %v2199, %v2210
        %v2218 = vadd.s32 %v2200, %v2210
        %v2219 = vadd.s32 %v2201, %v2210
        %v2220 = vadd.s32 %v2202, %v2210
        %v2221 = vadd.s32 %v2203, %v2210
        %v2222 = vadd.s32 %v2204, %v2210
        %v2223 = vadd.s32 %v2205, %v2210
        %v2224 = vadd.s32 %v2206, %v2210
        %v2225 = vadd.s32 %v2207, %v2210
        %v2226 = vadd.s32 %v2208, %v2210
        %v2227 = vlaneseq
        %v2228 = vand.u32 %v2227, 127
        %v2229 = vadd.s32 %v2228, 128
        %vm2230 = vcmp.eq.s32.totalorder %v2211, %v2228
        %vm2231 = vcmp.eq.s32.totalorder %v2211, %v2229
        %vm2232 = vcmp.eq.s32.totalorder %v2212, %v2228
        %vm2233 = vcmp.eq.s32.totalorder %v2212, %v2229
        %vm2234 = vcmp.eq.s32.totalorder %v2213, %v2228
        %vm2235 = vcmp.eq.s32.totalorder %v2213, %v2229
        %vm2236 = vcmp.eq.s32.totalorder %v2214, %v2228
        %vm2237 = vcmp.eq.s32.totalorder %v2214, %v2229
        %vm2238 = vcmp.eq.s32.totalorder %v2215, %v2228
        %vm2239 = vcmp.eq.s32.totalorder %v2215, %v2229
        %vm2240 = vcmp.eq.s32.totalorder %v2216, %v2228
        %vm2241 = vcmp.eq.s32.totalorder %v2216, %v2229
        %vm2242 = vcmp.eq.s32.totalorder %v2217, %v2228
        %vm2243 = vcmp.eq.s32.totalorder %v2217, %v2229
        %vm2244 = vcmp.eq.s32.totalorder %v2218, %v2228
        %vm2245 = vcmp.eq.s32.totalorder %v2218, %v2229
        %vm2246 = vcmp.eq.s32.totalorder %v2219, %v2228
        %vm2247 = vcmp.eq.s32.totalorder %v2219, %v2229
        %vm2248 = vcmp.eq.s32.totalorder %v2220, %v2228
        %vm2249 = vcmp.eq.s32.totalorder %v2220, %v2229
        %vm2250 = vcmp.eq.s32.totalorder %v2221, %v2228
        %vm2251 = vcmp.eq.s32.totalorder %v2221, %v2229
        %vm2252 = vcmp.eq.s32.totalorder %v2222, %v2228
        %vm2253 = vcmp.eq.s32.totalorder %v2222, %v2229
        %vm2254 = vcmp.eq.s32.totalorder %v2223, %v2228
        %vm2255 = vcmp.eq.s32.totalorder %v2223, %v2229
        %vm2256 = vcmp.eq.s32.totalorder %v2224, %v2228
        %vm2257 = vcmp.eq.s32.totalorder %v2224, %v2229
        %vm2258 = vcmp.eq.s32.totalorder %v2225, %v2228
        %vm2259 = vcmp.eq.s32.totalorder %v2225, %v2229
        %vm2260 = vcmp.eq.s32.totalorder %v2226, %v2228
        %vm2261 = vcmp.eq.s32.totalorder %v2226, %v2229
        %v2262 = vsel %vm2230, 0.0, %v1974
        %v2263 = vsel %vm2231, 0.0, %v1981
        %v2264 = vsel %vm2232, 0.0, %v1988
        %v2265 = vsel %vm2233, 0.0, %v1995
        %v2266 = vsel %vm2234, 0.0, %v2002
        %v2267 = vsel %vm2235, 0.0, %v2009
        %v2268 = vsel %vm2236, 0.0, %v2016
        %v2269 = vsel %vm2237, 0.0, %v2023
        %v2270 = vsel %vm2238, 0.0, %v2030
        %v2271 = vsel %vm2239, 0.0, %v2037
        %v2272 = vsel %vm2240, 0.0, %v2044
        %v2273 = vsel %vm2241, 0.0, %v2051
        %v2274 = vsel %vm2242, 0.0, %v2058
        %v2275 = vsel %vm2243, 0.0, %v2065
        %v2276 = vsel %vm2244, 0.0, %v2072
        %v2277 = vsel %vm2245, 0.0, %v2079
        %v2278 = vsel %vm2246, 0.0, %v2086
        %v2279 = vsel %vm2247, 0.0, %v2093
        %v2280 = vsel %vm2248, 0.0, %v2100
        %v2281 = vsel %vm2249, 0.0, %v2107
        %v2282 = vsel %vm2250, 0.0, %v2114
        %v2283 = vsel %vm2251, 0.0, %v2121
        %v2284 = vsel %vm2252, 0.0, %v2128
        %v2285 = vsel %vm2253, 0.0, %v2135
        %v2286 = vsel %vm2254, 0.0, %v2142
        %v2287 = vsel %vm2255, 0.0, %v2149
        %v2288 = vsel %vm2256, 0.0, %v2156
        %v2289 = vsel %vm2257, 0.0, %v2163
        %v2290 = vsel %vm2258, 0.0, %v2170
        %v2291 = vsel %vm2259, 0.0, %v2177
        %v2292 = vsel %vm2260, 0.0, %v2184
        %v2293 = vsel %vm2261, 0.0, %v2191
        %v2294 = vld [vmem:[%s258] sm:$0xff]
        %v2295 = vld [vmem:[%s258 + $0x8] sm:$0xff]
        %v2296 = vld [vmem:[%s258 + $0x10] sm:$0xff]
        %v2297 = vld [vmem:[%s258 + $0x18] sm:$0xff]
        %v2298 = vld [vmem:[%s258 + $0x20] sm:$0xff]
        %v2299 = vld [vmem:[%s258 + $0x28] sm:$0xff]
        %v2300 = vld [vmem:[%s258 + $0x30] sm:$0xff]
        %v2301 = vld [vmem:[%s258 + $0x38] sm:$0xff]
        %v2302 = vld [vmem:[%s258 + $0x40] sm:$0xff]
        %v2303 = vld [vmem:[%s258 + $0x48] sm:$0xff]
        %v2304 = vld [vmem:[%s258 + $0x50] sm:$0xff]
        %v2305 = vld [vmem:[%s258 + $0x58] sm:$0xff]
        %v2306 = vld [vmem:[%s258 + $0x60] sm:$0xff]
        %v2307 = vld [vmem:[%s258 + $0x68] sm:$0xff]
        %v2308 = vld [vmem:[%s258 + $0x70] sm:$0xff]
        %v2309 = vld [vmem:[%s258 + $0x78] sm:$0xff]
        %v2310 = vld [vmem:[%s258 + $0x80] sm:$0xff]
        %v2311 = vld [vmem:[%s258 + $0x88] sm:$0xff]
        %v2312 = vld [vmem:[%s258 + $0x90] sm:$0xff]
        %v2313 = vld [vmem:[%s258 + $0x98] sm:$0xff]
        %v2314 = vld [vmem:[%s258 + $0xa0] sm:$0xff]
        %v2315 = vld [vmem:[%s258 + $0xa8] sm:$0xff]
        %v2316 = vld [vmem:[%s258 + $0xb0] sm:$0xff]
        %v2317 = vld [vmem:[%s258 + $0xb8] sm:$0xff]
        %v2318 = vld [vmem:[%s258 + $0xc0] sm:$0xff]
        %v2319 = vld [vmem:[%s258 + $0xc8] sm:$0xff]
        %v2320 = vld [vmem:[%s258 + $0xd0] sm:$0xff]
        %v2321 = vld [vmem:[%s258 + $0xd8] sm:$0xff]
        %v2322 = vld [vmem:[%s258 + $0xe0] sm:$0xff]
        %v2323 = vld [vmem:[%s258 + $0xe8] sm:$0xff]
        %v2324 = vld [vmem:[%s258 + $0xf0] sm:$0xff]
        %v2325 = vld [vmem:[%s258 + $0xf8] sm:$0xff]
        %v2326 = vsel %vm2230, 1, 0
        %v2327 = vsel %vm2231, 1, 0
        %v2328 = vsel %vm2232, 1, 0
        %v2329 = vsel %vm2233, 1, 0
        %v2330 = vsel %vm2234, 1, 0
        %v2331 = vsel %vm2235, 1, 0
        %v2332 = vsel %vm2236, 1, 0
        %v2333 = vsel %vm2237, 1, 0
        %v2334 = vsel %vm2238, 1, 0
        %v2335 = vsel %vm2239, 1, 0
        %v2336 = vsel %vm2240, 1, 0
        %v2337 = vsel %vm2241, 1, 0
        %v2338 = vsel %vm2242, 1, 0
        %v2339 = vsel %vm2243, 1, 0
        %v2340 = vsel %vm2244, 1, 0
        %v2341 = vsel %vm2245, 1, 0
        %v2342 = vsel %vm2246, 1, 0
        %v2343 = vsel %vm2247, 1, 0
        %v2344 = vsel %vm2248, 1, 0
        %v2345 = vsel %vm2249, 1, 0
        %v2346 = vsel %vm2250, 1, 0
        %v2347 = vsel %vm2251, 1, 0
        %v2348 = vsel %vm2252, 1, 0
        %v2349 = vsel %vm2253, 1, 0
        %v2350 = vsel %vm2254, 1, 0
        %v2351 = vsel %vm2255, 1, 0
        %v2352 = vsel %vm2256, 1, 0
        %v2353 = vsel %vm2257, 1, 0
        %v2354 = vsel %vm2258, 1, 0
        %v2355 = vsel %vm2259, 1, 0
        %v2356 = vsel %vm2260, 1, 0
        %v2357 = vsel %vm2261, 1, 0
        %v2358 = vcvt.s32.f32 %v2326
        %v2359 = vcvt.s32.f32 %v2327
        %v2360 = vcvt.s32.f32 %v2328
        %v2361 = vcvt.s32.f32 %v2329
        %v2362 = vcvt.s32.f32 %v2330
        %v2363 = vcvt.s32.f32 %v2331
        %v2364 = vcvt.s32.f32 %v2332
        %v2365 = vcvt.s32.f32 %v2333
        %v2366 = vcvt.s32.f32 %v2334
        %v2367 = vcvt.s32.f32 %v2335
        %v2368 = vcvt.s32.f32 %v2336
        %v2369 = vcvt.s32.f32 %v2337
        %v2370 = vcvt.s32.f32 %v2338
        %v2371 = vcvt.s32.f32 %v2339
        %v2372 = vcvt.s32.f32 %v2340
        %v2373 = vcvt.s32.f32 %v2341
        %v2374 = vcvt.s32.f32 %v2342
        %v2375 = vcvt.s32.f32 %v2343
        %v2376 = vcvt.s32.f32 %v2344
        %v2377 = vcvt.s32.f32 %v2345
        %v2378 = vcvt.s32.f32 %v2346
        %v2379 = vcvt.s32.f32 %v2347
        %v2380 = vcvt.s32.f32 %v2348
        %v2381 = vcvt.s32.f32 %v2349
        %v2382 = vcvt.s32.f32 %v2350
        %v2383 = vcvt.s32.f32 %v2351
        %v2384 = vcvt.s32.f32 %v2352
        %v2385 = vcvt.s32.f32 %v2353
        %v2386 = vcvt.s32.f32 %v2354
        %v2387 = vcvt.s32.f32 %v2355
        %v2388 = vcvt.s32.f32 %v2356
        %v2389 = vcvt.s32.f32 %v2357
        %v2390 = vadd.f32 %v2294, %v2358
        %v2391 = vadd.f32 %v2295, %v2359
        %v2392 = vadd.f32 %v2296, %v2360
        %v2393 = vadd.f32 %v2297, %v2361
        %v2394 = vadd.f32 %v2298, %v2362
        %v2395 = vadd.f32 %v2299, %v2363
        %v2396 = vadd.f32 %v2300, %v2364
        %v2397 = vadd.f32 %v2301, %v2365
        %v2398 = vadd.f32 %v2302, %v2366
        %v2399 = vadd.f32 %v2303, %v2367
        %v2400 = vadd.f32 %v2304, %v2368
        %v2401 = vadd.f32 %v2305, %v2369
        %v2402 = vadd.f32 %v2306, %v2370
        %v2403 = vadd.f32 %v2307, %v2371
        %v2404 = vadd.f32 %v2308, %v2372
        %v2405 = vadd.f32 %v2309, %v2373
        %v2406 = vadd.f32 %v2310, %v2374
        %v2407 = vadd.f32 %v2311, %v2375
        %v2408 = vadd.f32 %v2312, %v2376
        %v2409 = vadd.f32 %v2313, %v2377
        %v2410 = vadd.f32 %v2314, %v2378
        %v2411 = vadd.f32 %v2315, %v2379
        %v2412 = vadd.f32 %v2316, %v2380
        %v2413 = vadd.f32 %v2317, %v2381
        %v2414 = vadd.f32 %v2318, %v2382
        %v2415 = vadd.f32 %v2319, %v2383
        %v2416 = vadd.f32 %v2320, %v2384
        %v2417 = vadd.f32 %v2321, %v2385
        %v2418 = vadd.f32 %v2322, %v2386
        %v2419 = vadd.f32 %v2323, %v2387
        %v2420 = vadd.f32 %v2324, %v2388
        %v2421 = vadd.f32 %v2325, %v2389
        %v2422 = vsub.f32 %v2262, %v2294
        %v2423 = vsub.f32 %v2263, %v2295
        %v2424 = vsub.f32 %v2264, %v2296
        %v2425 = vsub.f32 %v2265, %v2297
        %v2426 = vsub.f32 %v2266, %v2298
        %v2427 = vsub.f32 %v2267, %v2299
        %v2428 = vsub.f32 %v2268, %v2300
        %v2429 = vsub.f32 %v2269, %v2301
        %v2430 = vsub.f32 %v2270, %v2302
        %v2431 = vsub.f32 %v2271, %v2303
        %v2432 = vsub.f32 %v2272, %v2304
        %v2433 = vsub.f32 %v2273, %v2305
        %v2434 = vsub.f32 %v2274, %v2306
        %v2435 = vsub.f32 %v2275, %v2307
        %v2436 = vsub.f32 %v2276, %v2308
        %v2437 = vsub.f32 %v2277, %v2309
        %v2438 = vsub.f32 %v2278, %v2310
        %v2439 = vsub.f32 %v2279, %v2311
        %v2440 = vsub.f32 %v2280, %v2312
        %v2441 = vsub.f32 %v2281, %v2313
        %v2442 = vsub.f32 %v2282, %v2314
        %v2443 = vsub.f32 %v2283, %v2315
        %v2444 = vsub.f32 %v2284, %v2316
        %v2445 = vsub.f32 %v2285, %v2317
        %v2446 = vsub.f32 %v2286, %v2318
        %v2447 = vsub.f32 %v2287, %v2319
        %v2448 = vsub.f32 %v2288, %v2320
        %v2449 = vsub.f32 %v2289, %v2321
        %v2450 = vsub.f32 %v2290, %v2322
        %v2451 = vsub.f32 %v2291, %v2323
        %v2452 = vsub.f32 %v2292, %v2324
        %v2453 = vsub.f32 %v2293, %v2325
        %v2454 = vand.u32 2147483647, %v2422
        %v2455 = vand.u32 2147483647, %v2423
        %v2456 = vand.u32 2147483647, %v2424
        %v2457 = vand.u32 2147483647, %v2425
        %v2458 = vand.u32 2147483647, %v2426
        %v2459 = vand.u32 2147483647, %v2427
        %v2460 = vand.u32 2147483647, %v2428
        %v2461 = vand.u32 2147483647, %v2429
        %v2462 = vand.u32 2147483647, %v2430
        %v2463 = vand.u32 2147483647, %v2431
        %v2464 = vand.u32 2147483647, %v2432
        %v2465 = vand.u32 2147483647, %v2433
        %v2466 = vand.u32 2147483647, %v2434
        %v2467 = vand.u32 2147483647, %v2435
        %v2468 = vand.u32 2147483647, %v2436
        %v2469 = vand.u32 2147483647, %v2437
        %v2470 = vand.u32 2147483647, %v2438
        %v2471 = vand.u32 2147483647, %v2439
        %v2472 = vand.u32 2147483647, %v2440
        %v2473 = vand.u32 2147483647, %v2441
        %v2474 = vand.u32 2147483647, %v2442
        %v2475 = vand.u32 2147483647, %v2443
        %v2476 = vand.u32 2147483647, %v2444
        %v2477 = vand.u32 2147483647, %v2445
        %v2478 = vand.u32 2147483647, %v2446
        %v2479 = vand.u32 2147483647, %v2447
        %v2480 = vand.u32 2147483647, %v2448
        %v2481 = vand.u32 2147483647, %v2449
        %v2482 = vand.u32 2147483647, %v2450
        %v2483 = vand.u32 2147483647, %v2451
        %v2484 = vand.u32 2147483647, %v2452
        %v2485 = vand.u32 2147483647, %v2453
        %v2486 = vrcp.pop %v2390
        %v2487 = vmul.f32 %v2454, %v2486
        %v2488 = vrcp.pop %v2391
        %v2489 = vmul.f32 %v2455, %v2488
        %v2490 = vrcp.pop %v2392
        %v2491 = vmul.f32 %v2456, %v2490
        %v2492 = vrcp.pop %v2393
        %v2493 = vmul.f32 %v2457, %v2492
        %v2494 = vrcp.pop %v2394
        %v2495 = vmul.f32 %v2458, %v2494
        %v2496 = vrcp.pop %v2395
        %v2497 = vmul.f32 %v2459, %v2496
        %v2498 = vrcp.pop %v2396
        %v2499 = vmul.f32 %v2460, %v2498
        %v2500 = vrcp.pop %v2397
        %v2501 = vmul.f32 %v2461, %v2500
        %v2502 = vrcp.pop %v2398
        %v2503 = vmul.f32 %v2462, %v2502
        %v2504 = vrcp.pop %v2399
        %v2505 = vmul.f32 %v2463, %v2504
        %v2506 = vrcp.pop %v2400
        %v2507 = vmul.f32 %v2464, %v2506
        %v2508 = vrcp.pop %v2401
        %v2509 = vmul.f32 %v2465, %v2508
        %v2510 = vrcp.pop %v2402
        %v2511 = vmul.f32 %v2466, %v2510
        %v2512 = vrcp.pop %v2403
        %v2513 = vmul.f32 %v2467, %v2512
        %v2514 = vrcp.pop %v2404
        %v2515 = vmul.f32 %v2468, %v2514
        %v2516 = vrcp.pop %v2405
        %v2517 = vmul.f32 %v2469, %v2516
        %v2518 = vrcp.pop %v2406
        %v2519 = vmul.f32 %v2470, %v2518
        %v2520 = vrcp.pop %v2407
        %v2521 = vmul.f32 %v2471, %v2520
        %v2522 = vrcp.pop %v2408
        %v2523 = vmul.f32 %v2472, %v2522
        %v2524 = vrcp.pop %v2409
        %v2525 = vmul.f32 %v2473, %v2524
        %v2526 = vrcp.pop %v2410
        %v2527 = vmul.f32 %v2474, %v2526
        %v2528 = vrcp.pop %v2411
        %v2529 = vmul.f32 %v2475, %v2528
        %v2530 = vrcp.pop %v2412
        %v2531 = vmul.f32 %v2476, %v2530
        %v2532 = vrcp.pop %v2413
        %v2533 = vmul.f32 %v2477, %v2532
        %v2534 = vrcp.pop %v2414
        %v2535 = vmul.f32 %v2478, %v2534
        %v2536 = vrcp.pop %v2415
        %v2537 = vmul.f32 %v2479, %v2536
        %v2538 = vrcp.pop %v2416
        %v2539 = vmul.f32 %v2480, %v2538
        %v2540 = vrcp.pop %v2417
        %v2541 = vmul.f32 %v2481, %v2540
        %v2542 = vrcp.pop %v2418
        %v2543 = vmul.f32 %v2482, %v2542
        %v2544 = vrcp.pop %v2419
        %v2545 = vmul.f32 %v2483, %v2544
        %v2546 = vrcp.pop %v2420
        %v2547 = vmul.f32 %v2484, %v2546
        %v2548 = vrcp.pop %v2421
        %v2549 = vmul.f32 %v2485, %v2548
        %v2550 = vld [vmem:[#allocation2] sm:$0x3]
        %v2551 = vadd.f32 %v2487, %v2491
        %v2552 = vadd.f32 %v2551, %v2495
        %v2553 = vadd.f32 %v2552, %v2499
        %v2554 = vadd.f32 %v2553, %v2503
        %v2555 = vadd.f32 %v2554, %v2507
        %v2556 = vadd.f32 %v2555, %v2511
        %v2557 = vadd.f32 %v2556, %v2515
        %v2558 = vadd.f32 %v2557, %v2519
        %v2559 = vadd.f32 %v2558, %v2523
        %v2560 = vadd.f32 %v2559, %v2527
        %v2561 = vadd.f32 %v2560, %v2531
        %v2562 = vadd.f32 %v2561, %v2535
        %v2563 = vadd.f32 %v2562, %v2539
        %v2564 = vadd.f32 %v2563, %v2543
        %v2565 = vadd.f32 %v2564, %v2547
        %v2566 = vrot.slane %v2565, 4
        %v2567 = vadd.f32 %v2565, %v2566
        %v2568 = vrot.slane %v2567, 2
        %v2569 = vadd.f32 %v2567, %v2568
        %v2570 = vrot.slane %v2569, 1
        %v2571 = vadd.f32 %v2569, %v2570
        %v2572 = vadd.f32 %v2489, %v2493
        %v2573 = vadd.f32 %v2572, %v2497
        %v2574 = vadd.f32 %v2573, %v2501
        %v2575 = vadd.f32 %v2574, %v2505
        %v2576 = vadd.f32 %v2575, %v2509
        %v2577 = vadd.f32 %v2576, %v2513
        %v2578 = vadd.f32 %v2577, %v2517
        %v2579 = vadd.f32 %v2578, %v2521
        %v2580 = vadd.f32 %v2579, %v2525
        %v2581 = vadd.f32 %v2580, %v2529
        %v2582 = vadd.f32 %v2581, %v2533
        %v2583 = vadd.f32 %v2582, %v2537
        %v2584 = vadd.f32 %v2583, %v2541
        %v2585 = vadd.f32 %v2584, %v2545
        %v2586 = vadd.f32 %v2585, %v2549
        %v2587 = vrot.slane %v2586, 4
        %v2588 = vadd.f32 %v2586, %v2587
        %v2589 = vrot.slane %v2588, 2
        %v2590 = vadd.f32 %v2588, %v2589
        %v2591 = vrot.slane %v2590, 1
        %v2592 = vadd.f32 %v2590, %v2591
        %v2595 = vcombine.low %v2571, %v2592
        %v2597 = vunpack.c.l.s4 1966171168
        %v2598 = vunpack.c.0.s8 %v2597
        %v2599 = vlaneseq
        %v2600 = vshrl.u32 %v2599, 7
        %v2601 = vsub.s32 %v2598, %v2600
        %v2602 = vrot.slane %v2595, %v2601
        %v2604 = vunpack.c.l.s4 1966171168
        %v2605 = vunpack.c.0.s8 %v2604
        %v2606 = vlaneseq
        %v2607 = vshrl.u32 %v2606, 7
        %v2608 = vsub.s32 %v2605, %v2607
        %v2609 = vrot.slane %v2602, %v2608
        %v2611 = vadd.f32 %v2550, %v2609
        %v2612 = vlaneseq
        %vm2613 = vcmp.ge.s32.totalorder %v2612, 0
        %vm2614 = vcmp.lt.s32.totalorder %v2612, 256
        %vm2615 = vmand %vm2613, %vm2614
        %2616 = vst.msk [vmem:[#allocation2] sm:$0x3] %vm2615, %v2611
        %p2617 = scmp.eq.s32.totalorder %s17, 1
        // Predicated region
        $region45: #{tpu_custom_call.1} parent=39 // pred_check
          %p2618 = pneg %p2617
        $region46: #{tpu_custom_call.1} parent=39 // pred_check_branch
          %2620 = sbr.rel (%p2618) target = $region48
        $region47: #{tpu_custom_call.1} parent=39 // pred_region
          %v2621 = vld [vmem:[#allocation2] sm:$0x3]
          %v2623 = vlaneseq
          %v2624 = vshrl.u32 %v2623, 7
          %v2625 = vsub.s32 0, %v2624
          %v2626 = vrot.slane %v2621, %v2625
          %v2627 = vlaneseq
          %v2628 = vshrl.u32 %v2627, 7
          %v2629 = vsub.s32 1, %v2628
          %v2630 = vrot.slane %v2621, %v2629
          %vm2633 = vcmask 1040384
          %v2634 = vsel %vm2633, %v2626, 0.0
          %v2635 = vsel %vm2633, %v2630, 0.0
          %v2636 = vadd.f32 %v2634, %v2635
          %2637 = vadd.xlane.f32.xlu0 %v2636
          %v2638 = vpop.xlane.xlu0 %2637
          %v2639 = vrot.slane %v2638, 4
          %v2640 = vadd.f32 %v2638, %v2639
          %v2641 = vrot.slane %v2640, 2
          %v2642 = vadd.f32 %v2640, %v2641
          %v2643 = vrot.slane %v2642, 1
          %v2644 = vadd.f32 %v2642, %v2643
          %s2645 = vtos %v2644
          %s2646 = smul.f32 %s2645, 1.5318628e-05
          %s2647 = scalar_lea.smem [#allocation3], 0
          %2648 = sst [smem:[%s2647]] %s2646
        $region48: #{tpu_custom_call.1} parent=39 // pred_fallthru
          _
        // Predicated region
        $region49: #{tpu_custom_call.1} parent=39 // pred_check
          %p2649 = pneg %p150
        $region50: #{tpu_custom_call.1} parent=39 // pred_check_branch
          %2651 = sbr.rel (%p2649) target = $region52
        $region51: #{tpu_custom_call.1} parent=39 // pred_region
          %s2653 = ssub.s32 16, 16
          %2654 = vsyncadd [#allocation4], %s2653
          %2657 = dma.smem_to_hbm [#allocation3], 16, %s5, [#allocation4]
        $region52: #{tpu_custom_call.1} parent=39 // pred_fallthru
          _
        // Predicated region
        $region53: #{tpu_custom_call.1} parent=39 // pred_check
          %p2658 = pneg %p150
        $region54: #{tpu_custom_call.1} parent=39 // pred_check_branch
          %2660 = sbr.rel (%p2658) target = $region56
        $region55: #{tpu_custom_call.1} parent=39 // pred_region
          %2661 = dma.done [#allocation4], 16
        $region56: #{tpu_custom_call.1} parent=39 // pred_fallthru
          _
        %2662 = sfence
      $region40: #{tpu_custom_call.1} parent=5 // pred_fallthru
        _
      %p2663 = scmp.le.s32.totalorder 2, %s12
      // Predicated region
      $region57: #{tpu_custom_call.1} parent=5 // pred_check
        %p2664 = pneg %p2663
      $region58: #{tpu_custom_call.1} parent=5 // pred_check_branch
        %2666 = sbr.rel (%p2664) target = $region60
      $region59: #{tpu_custom_call.1} parent=5 // pred_region
        %s2667 = ssub.s32 %s12, 2
      $region60: #{tpu_custom_call.1} parent=5 // pred_fallthru
        _
    $region6: #{tpu_custom_call.1} parent=1 // loop_footer
      %s16 = sadd.s32 1, %s12
    $region7: #{tpu_custom_call.1} parent=1 // loop_footer_branch
      %11 = sbr.rel target = $region3
    $region8: #{tpu_custom_call.1} parent=1 // loop_exit
      _
    %2668 = vsyncpa [#allocation4], 1
    %s2669 = scalar_lea.sflag [#allocation4], 1
    %2670 = vsyncpa %s2669, 1

</llo_original>
